<compile_context>
chip_gen: v6e
topology: v6e:2x2x1
jax: 0.10.0
libtpu: 0.0.40
codegen_flags: <defaults>
</compile_context>

<pallas_src>
import functools
import math

import jax
import jax.numpy as jnp
from jax import lax
from jax.experimental import pallas as pl
from jax.experimental.pallas import tpu as pltpu

_LANE = 128
_TILE_R = 512                 # rows per grid tile (multiple of 8); 5 arrays x 2 bufs x 256 KiB ≈ 2.5 MiB VMEM
_ITERS_SER = 48               # power-series terms (tuned for moderate shape params; was 128)
_ITERS_CF = 48                # continued-fraction terms (was 128)
_UNROLL = 4                   # manual unroll factor of the inner loops

_HALF_LOG_2PI = 0.9189385332046727    # 0.5*log(2*pi)
_LGAMMA_HALF = 0.5723649429247001     # lgamma(0.5) = log(sqrt(pi))
_LOG2 = 0.6931471805599453

# Lanczos (g=7, 9 coefficients)
_LANCZOS_G = 7.0
_LANCZOS_C = (
    0.99999999999980993,
    676.5203681218851,
    -1259.1392167224028,
    771.32342877765313,
    -176.61502916214059,
    12.507343278686905,
    -0.13857109526572012,
    9.9843695780195716e-6,
    1.5056327351493116e-7,
)


def _lgamma_pos(z):
    """lgamma(z) for z > 0, via lgamma(z) = lgamma(z+1) - log(z) + Lanczos."""
    w = z  # Lanczos argument is (z+1); w = (z+1) - 1 = z
    acc = jnp.full_like(w, _LANCZOS_C[0])
    for i in range(1, 9):
        acc = acc + _LANCZOS_C[i] / (w + float(i))
    t = w + _LANCZOS_G + 0.5
    lg_zp1 = _HALF_LOG_2PI + (w + 0.5) * jnp.log(t) - t + jnp.log(acc)
    return lg_zp1 - jnp.log(z)


def _recip(y, refine=False):
    """EUP approximate reciprocal, optionally with one Newton refinement."""
    r = pl.reciprocal(y, approx=True)
    if refine:
        r = r * (2.0 - y * r)
    return r


def _unrolled_fori(n_iters, unroll, body, init):
    """fori_loop with a manually unrolled body (n_iters % unroll == 0)."""
    assert n_iters % unroll == 0

    def outer(j, carry):
        for u in range(unroll):
            carry = body(j * unroll + u, carry)
        return carry

    return lax.fori_loop(0, n_iters // unroll, outer, init)


def _igammap(a, x, lg_a, log_x):
    """Regularized lower incomplete gamma P(a, x); a > 0, x > 0 (f32 tiles)."""
    prefac = jnp.exp(a * log_x - x - lg_a)

    # --- power series for P(a,x) (selected where x < a + 1) ---
    inv_a = 1.0 / a

    def ser_body(i, carry):
        delt, summ = carry
        nf = (i + 1).astype(jnp.float32)
        delt = delt * x * _recip(a + nf)
        return delt, summ + delt

    _, summ = _unrolled_fori(_ITERS_SER, _UNROLL, ser_body, (inv_a, inv_a))
    p_series = summ * prefac

    # --- modified-Lentz continued fraction for Q(a,x) (x >= a + 1) ---
    fpmin = 1e-30
    bx = x + 1.0 - a
    b0g = jnp.where(jnp.abs(bx) < fpmin, fpmin, bx)
    d0 = _recip(b0g, refine=True)
    c0 = jnp.full_like(x, 1.0 / fpmin)
    h0 = d0

    def cf_body(i, carry):
        c, d, h = carry                      # d carries 1/d_true from prev step
        nf = (i + 1).astype(jnp.float32)
        an = nf * (a - nf)                   # = -n*(n - a)
        b = bx + 2.0 * nf
        d = an * d + b
        d = jnp.where(jnp.abs(d) < fpmin, fpmin, d)
        c = b + an * _recip(c, refine=True)
        c = jnp.where(jnp.abs(c) < fpmin, fpmin, c)
        d = _recip(d, refine=True)
        return c, d, h * (d * c)

    _, _, h = _unrolled_fori(_ITERS_CF, _UNROLL, cf_body, (c0, d0, h0))
    p_cf = 1.0 - prefac * h

    return jnp.clip(jnp.where(x < a + 1.0, p_series, p_cf), 0.0, 1.0)


def _crps_csgd_kernel(mean_ref, std_ref, shift_ref, tgt_ref, loss_ref, *, mean_reg):
    # clamp(output, min=1e-10) applied channel-wise (as in the torch module)
    mean = jnp.maximum(mean_ref[...], 1e-10)
    std = jnp.maximum(std_ref[...], 1e-10)
    shift = jnp.maximum(shift_ref[...], 1e-10)
    target = tgt_ref[...]

    if mean_reg:
        std_reg = std + jnp.sqrt(mean)
    else:
        std_reg = std

    s2 = std_reg * std_reg
    shp = (mean * mean) / s2
    scale = s2 / mean
    inv_scale = mean / s2
    tsh = target + shift

    xs = jnp.maximum(shift * inv_scale, 1e-30)
    xt = jnp.maximum(tsh * inv_scale, 1e-30)
    x2 = 2.0 * xs
    shp2 = 2.0 * shp

    # lgamma values computed once and reused (Lanczos is ~8 divides + 2 logs each)
    log_shp = jnp.log(shp)
    lg_shp = _lgamma_pos(shp)
    lg_shp1 = lg_shp + log_shp               # lgamma(shp + 1)
    lg_2shp = _lgamma_pos(shp2)
    lg_shp_half = _lgamma_pos(shp + 0.5)

    log_xs = jnp.log(xs)
    log_xt = jnp.log(xt)
    log_x2 = log_xs + _LOG2

    cdf_shift = _igammap(shp, xs, lg_shp, log_xs)
    cdf_tsh = _igammap(shp, xt, lg_shp, log_xt)
    cdf_2s_2k = _igammap(shp2, x2, lg_2shp, log_x2)

    # P(a+1, x) = P(a, x) - exp(a*log(x) - x - lgamma(a+1))  (no extra igamma calls)
    cdf_shift_k1 = jnp.clip(cdf_shift - jnp.exp(shp * log_xs - xs - lg_shp1), 0.0, 1.0)
    cdf_tsh_k1 = jnp.clip(cdf_tsh - jnp.exp(shp * log_xt - xt - lg_shp1), 0.0, 1.0)

    # beta_f(0.5, shape + 0.5) = exp(lgamma(0.5) + lgamma(shape+0.5) - lgamma(shape+1))
    beta = jnp.exp(_LGAMMA_HALF + lg_shp_half - lg_shp1)

    sum1 = tsh * (2.0 * cdf_tsh - 1.0)
    sum2 = -(shp * scale * (1.0 / math.pi)) * beta * (1.0 - cdf_2s_2k)
    sum3 = scale * shp * (1.0 + 2.0 * cdf_shift * cdf_shift_k1
                          - cdf_shift * cdf_shift - 2.0 * cdf_tsh_k1)
    sum4 = -shift * cdf_shift * cdf_shift

    loss_ref[...] = sum1 + sum2 + sum3 + sum4


def crps_csgd_loss(output_notclamped, target, mean_reg=True, return_mean=True):
    """output_notclamped: (N, 3, H, W)  [NCHW, like torch];  target: (N, H, W)."""
    n, c, h, w = output_notclamped.shape
    assert c == 3
    flat = n * h * w

    rows_needed = -(-flat // _LANE)
    tile_r = min(_TILE_R, ((rows_needed + 7) // 8) * 8)      # multiple of 8
    rows = ((rows_needed + tile_r - 1) // tile_r) * tile_r    # multiple of tile_r
    pad = rows * _LANE - flat

    def prep(x):
        x = x.reshape(flat).astype(jnp.float32)
        if pad:
            x = jnp.concatenate([x, jnp.ones((pad,), jnp.float32)])
        return x.reshape(rows, _LANE)

    mean2 = prep(output_notclamped[:, 0])
    std2 = prep(output_notclamped[:, 1])
    shift2 = prep(output_notclamped[:, 2])
    tgt2 = prep(target)

    kernel = functools.partial(_crps_csgd_kernel, mean_reg=mean_reg)
    block = pl.BlockSpec((tile_r, _LANE), lambda i: (i, 0))
    loss2 = pl.pallas_call(
        kernel,
        out_shape=jax.ShapeDtypeStruct((rows, _LANE), jnp.float32),
        grid=(rows // tile_r,),
        in_specs=[block, block, block, block],
        out_specs=block,
        compiler_params=pltpu.CompilerParams(
            dimension_semantics=("parallel",)),
    )(mean2, std2, shift2, tgt2)

    loss = loss2.reshape(-1)[:flat].reshape(n, h, w)
    return jnp.mean(loss) if return_mean else loss


def _reference_loss(output_notclamped, target, mean_reg=True):
    """Pure-JAX reference (lax-backed gammainc) for verification."""
    from jax.scipy.special import gammainc, gammaln

    out = jnp.maximum(output_notclamped.astype(jnp.float32), 1e-10)
    mean, std, shift = out[:, 0], out[:, 1], out[:, 2]
    std_reg = std + jnp.sqrt(mean) if mean_reg else std
    shp = mean ** 2 / std_reg ** 2
    scale = std_reg ** 2 / mean
    tsh = target.astype(jnp.float32) + shift

    cdf = lambda inp, k, s: gammainc(k, inp / s)
    beta = jnp.exp(gammaln(0.5) + gammaln(shp + 0.5) - gammaln(shp + 1.0))
    cdf_shift = cdf(shift, shp, scale)
    sum1 = tsh * (2.0 * cdf(tsh, shp, scale) - 1.0)
    sum2 = -(shp * scale / jnp.pi) * beta * (1.0 - cdf(2.0 * shift, 2.0 * shp, scale))
    sum3 = scale * shp * (1.0 + 2.0 * cdf_shift * cdf(shift, shp + 1.0, scale)
                          - cdf_shift ** 2 - 2.0 * cdf(tsh, shp + 1.0, scale))
    sum4 = -shift * cdf_shift ** 2
    return jnp.mean(sum1 + sum2 + sum3 + sum4)


if __name__ == "__main__":
    key = jax.random.PRNGKey(0)
    k1, k2 = jax.random.split(key)
    N, H, W = 2, 16, 16
    output_notclamped = jax.random.uniform(
        k1, (N, 3, H, W), dtype=jnp.float32, minval=0.2, maxval=3.0)
    target = jax.random.uniform(
        k2, (N, H, W), dtype=jnp.float32, minval=0.0, maxval=3.0)

    loss = crps_csgd_loss(output_notclamped, target)
    loss = jax.block_until_ready(loss)

    ref = jax.block_until_ready(_reference_loss(output_notclamped, target))
    err = float(jnp.abs(loss - ref))
    assert bool(jnp.isfinite(loss)), "kernel produced non-finite loss"
    assert err < 1e-2 * max(1.0, abs(float(ref))), f"mismatch: {float(loss)} vs {float(ref)}"
    # TODO(synk): custom backward (CDFGamma.backward / gammainc_der) not needed for the
    # forward pass and is not implemented.
    print("KERNEL_OK")
</pallas_src>

<mosaic_0001>
module attributes {stable_mosaic.version = 11 : i64} {
  func.func @_crps_csgd_kernel(%arg0: i32, %arg1: memref<8x128xf32, #tpu.memory_space<vmem>>, %arg2: memref<8x128xf32, #tpu.memory_space<vmem>>, %arg3: memref<8x128xf32, #tpu.memory_space<vmem>>, %arg4: memref<8x128xf32, #tpu.memory_space<vmem>>, %arg5: memref<8x128xf32, #tpu.memory_space<vmem>>) attributes {dimension_semantics = [#tpu.dimension_semantics<parallel>], iteration_bounds = array<i64: 1>, scalar_prefetch = 0 : i64, scratch_operands = 0 : i64, tpu.core_type = #tpu.core_type<tc>, window_params = [{transform_indices = @transform_0, window_bounds = array<i64: 8, 128>}, {transform_indices = @transform_1, window_bounds = array<i64: 8, 128>}, {transform_indices = @transform_2, window_bounds = array<i64: 8, 128>}, {transform_indices = @transform_3, window_bounds = array<i64: 8, 128>}, {transform_indices = @transform_4, window_bounds = array<i64: 8, 128>}]} {
    %c0 = arith.constant 0 : index
    %c0_0 = arith.constant 0 : index
    %0 = vector.load %arg1[%c0, %c0_0] : memref<8x128xf32, #tpu.memory_space<vmem>>, vector<8x128xf32>
    %cst = arith.constant 1.000000e-10 : f32
    %1 = vector.broadcast %cst : f32 to vector<8x128xf32>
    %2 = arith.maximumf %0, %1 : vector<8x128xf32>
    %c0_1 = arith.constant 0 : index
    %c0_2 = arith.constant 0 : index
    %3 = vector.load %arg2[%c0_1, %c0_2] : memref<8x128xf32, #tpu.memory_space<vmem>>, vector<8x128xf32>
    %cst_3 = arith.constant 1.000000e-10 : f32
    %4 = vector.broadcast %cst_3 : f32 to vector<8x128xf32>
    %5 = arith.maximumf %3, %4 : vector<8x128xf32>
    %c0_4 = arith.constant 0 : index
    %c0_5 = arith.constant 0 : index
    %6 = vector.load %arg3[%c0_4, %c0_5] : memref<8x128xf32, #tpu.memory_space<vmem>>, vector<8x128xf32>
    %cst_6 = arith.constant 1.000000e-10 : f32
    %7 = vector.broadcast %cst_6 : f32 to vector<8x128xf32>
    %8 = arith.maximumf %6, %7 : vector<8x128xf32>
    %c0_7 = arith.constant 0 : index
    %c0_8 = arith.constant 0 : index
    %9 = vector.load %arg4[%c0_7, %c0_8] : memref<8x128xf32, #tpu.memory_space<vmem>>, vector<8x128xf32>
    %10 = math.sqrt %2 : vector<8x128xf32>
    %11 = arith.addf %5, %10 : vector<8x128xf32>
    %12 = arith.mulf %11, %11 : vector<8x128xf32>
    %13 = arith.mulf %2, %2 : vector<8x128xf32>
    %14 = arith.divf %13, %12 : vector<8x128xf32>
    %15 = arith.divf %12, %2 : vector<8x128xf32>
    %16 = arith.divf %2, %12 : vector<8x128xf32>
    %17 = arith.addf %9, %8 : vector<8x128xf32>
    %18 = arith.mulf %8, %16 : vector<8x128xf32>
    %cst_9 = arith.constant 1.000000e-30 : f32
    %19 = vector.broadcast %cst_9 : f32 to vector<8x128xf32>
    %20 = arith.maximumf %18, %19 : vector<8x128xf32>
    %21 = arith.mulf %17, %16 : vector<8x128xf32>
    %cst_10 = arith.constant 1.000000e-30 : f32
    %22 = vector.broadcast %cst_10 : f32 to vector<8x128xf32>
    %23 = arith.maximumf %21, %22 : vector<8x128xf32>
    %cst_11 = arith.constant 2.000000e+00 : f32
    %24 = vector.broadcast %cst_11 : f32 to vector<8x128xf32>
    %25 = arith.mulf %24, %20 : vector<8x128xf32>
    %cst_12 = arith.constant 2.000000e+00 : f32
    %26 = vector.broadcast %cst_12 : f32 to vector<8x128xf32>
    %27 = arith.mulf %26, %14 : vector<8x128xf32>
    %28 = math.log %14 : vector<8x128xf32>
    %cst_13 = arith.constant 1.000000e+00 : f32
    %29 = vector.broadcast %cst_13 : f32 to vector<8x128xf32>
    %cst_14 = arith.constant 1.000000e+00 : f32
    %30 = vector.broadcast %cst_14 : f32 to vector<8x128xf32>
    %31 = arith.addf %14, %30 : vector<8x128xf32>
    %cst_15 = arith.constant 676.520386 : f32
    %32 = vector.broadcast %cst_15 : f32 to vector<8x128xf32>
    %33 = arith.divf %32, %31 : vector<8x128xf32>
    %34 = arith.addf %29, %33 : vector<8x128xf32>
    %cst_16 = arith.constant 2.000000e+00 : f32
    %35 = vector.broadcast %cst_16 : f32 to vector<8x128xf32>
    %36 = arith.addf %14, %35 : vector<8x128xf32>
    %cst_17 = arith.constant -1259.13916 : f32
    %37 = vector.broadcast %cst_17 : f32 to vector<8x128xf32>
    %38 = arith.divf %37, %36 : vector<8x128xf32>
    %39 = arith.addf %34, %38 : vector<8x128xf32>
    %cst_18 = arith.constant 3.000000e+00 : f32
    %40 = vector.broadcast %cst_18 : f32 to vector<8x128xf32>
    %41 = arith.addf %14, %40 : vector<8x128xf32>
    %cst_19 = arith.constant 771.323425 : f32
    %42 = vector.broadcast %cst_19 : f32 to vector<8x128xf32>
    %43 = arith.divf %42, %41 : vector<8x128xf32>
    %44 = arith.addf %39, %43 : vector<8x128xf32>
    %cst_20 = arith.constant 4.000000e+00 : f32
    %45 = vector.broadcast %cst_20 : f32 to vector<8x128xf32>
    %46 = arith.addf %14, %45 : vector<8x128xf32>
    %cst_21 = arith.constant -176.615036 : f32
    %47 = vector.broadcast %cst_21 : f32 to vector<8x128xf32>
    %48 = arith.divf %47, %46 : vector<8x128xf32>
    %49 = arith.addf %44, %48 : vector<8x128xf32>
    %cst_22 = arith.constant 5.000000e+00 : f32
    %50 = vector.broadcast %cst_22 : f32 to vector<8x128xf32>
    %51 = arith.addf %14, %50 : vector<8x128xf32>
    %cst_23 = arith.constant 12.5073433 : f32
    %52 = vector.broadcast %cst_23 : f32 to vector<8x128xf32>
    %53 = arith.divf %52, %51 : vector<8x128xf32>
    %54 = arith.addf %49, %53 : vector<8x128xf32>
    %cst_24 = arith.constant 6.000000e+00 : f32
    %55 = vector.broadcast %cst_24 : f32 to vector<8x128xf32>
    %56 = arith.addf %14, %55 : vector<8x128xf32>
    %cst_25 = arith.constant -0.138571098 : f32
    %57 = vector.broadcast %cst_25 : f32 to vector<8x128xf32>
    %58 = arith.divf %57, %56 : vector<8x128xf32>
    %59 = arith.addf %54, %58 : vector<8x128xf32>
    %cst_26 = arith.constant 7.000000e+00 : f32
    %60 = vector.broadcast %cst_26 : f32 to vector<8x128xf32>
    %61 = arith.addf %14, %60 : vector<8x128xf32>
    %cst_27 = arith.constant 9.98436917E-6 : f32
    %62 = vector.broadcast %cst_27 : f32 to vector<8x128xf32>
    %63 = arith.divf %62, %61 : vector<8x128xf32>
    %64 = arith.addf %59, %63 : vector<8x128xf32>
    %cst_28 = arith.constant 8.000000e+00 : f32
    %65 = vector.broadcast %cst_28 : f32 to vector<8x128xf32>
    %66 = arith.addf %14, %65 : vector<8x128xf32>
    %cst_29 = arith.constant 1.50563267E-7 : f32
    %67 = vector.broadcast %cst_29 : f32 to vector<8x128xf32>
    %68 = arith.divf %67, %66 : vector<8x128xf32>
    %69 = arith.addf %64, %68 : vector<8x128xf32>
    %cst_30 = arith.constant 7.000000e+00 : f32
    %70 = vector.broadcast %cst_30 : f32 to vector<8x128xf32>
    %71 = arith.addf %14, %70 : vector<8x128xf32>
    %cst_31 = arith.constant 5.000000e-01 : f32
    %72 = vector.broadcast %cst_31 : f32 to vector<8x128xf32>
    %73 = arith.addf %71, %72 : vector<8x128xf32>
    %cst_32 = arith.constant 5.000000e-01 : f32
    %74 = vector.broadcast %cst_32 : f32 to vector<8x128xf32>
    %75 = arith.addf %14, %74 : vector<8x128xf32>
    %76 = math.log %73 : vector<8x128xf32>
    %77 = arith.mulf %75, %76 : vector<8x128xf32>
    %cst_33 = arith.constant 0.918938517 : f32
    %78 = vector.broadcast %cst_33 : f32 to vector<8x128xf32>
    %79 = arith.addf %78, %77 : vector<8x128xf32>
    %80 = arith.subf %79, %73 : vector<8x128xf32>
    %81 = math.log %69 : vector<8x128xf32>
    %82 = arith.addf %80, %81 : vector<8x128xf32>
    %83 = math.log %14 : vector<8x128xf32>
    %84 = arith.subf %82, %83 : vector<8x128xf32>
    %85 = arith.addf %84, %28 : vector<8x128xf32>
    %cst_34 = arith.constant 1.000000e+00 : f32
    %86 = vector.broadcast %cst_34 : f32 to vector<8x128xf32>
    %cst_35 = arith.constant 1.000000e+00 : f32
    %87 = vector.broadcast %cst_35 : f32 to vector<8x128xf32>
    %88 = arith.addf %27, %87 : vector<8x128xf32>
    %cst_36 = arith.constant 676.520386 : f32
    %89 = vector.broadcast %cst_36 : f32 to vector<8x128xf32>
    %90 = arith.divf %89, %88 : vector<8x128xf32>
    %91 = arith.addf %86, %90 : vector<8x128xf32>
    %cst_37 = arith.constant 2.000000e+00 : f32
    %92 = vector.broadcast %cst_37 : f32 to vector<8x128xf32>
    %93 = arith.addf %27, %92 : vector<8x128xf32>
    %cst_38 = arith.constant -1259.13916 : f32
    %94 = vector.broadcast %cst_38 : f32 to vector<8x128xf32>
    %95 = arith.divf %94, %93 : vector<8x128xf32>
    %96 = arith.addf %91, %95 : vector<8x128xf32>
    %cst_39 = arith.constant 3.000000e+00 : f32
    %97 = vector.broadcast %cst_39 : f32 to vector<8x128xf32>
    %98 = arith.addf %27, %97 : vector<8x128xf32>
    %cst_40 = arith.constant 771.323425 : f32
    %99 = vector.broadcast %cst_40 : f32 to vector<8x128xf32>
    %100 = arith.divf %99, %98 : vector<8x128xf32>
    %101 = arith.addf %96, %100 : vector<8x128xf32>
    %cst_41 = arith.constant 4.000000e+00 : f32
    %102 = vector.broadcast %cst_41 : f32 to vector<8x128xf32>
    %103 = arith.addf %27, %102 : vector<8x128xf32>
    %cst_42 = arith.constant -176.615036 : f32
    %104 = vector.broadcast %cst_42 : f32 to vector<8x128xf32>
    %105 = arith.divf %104, %103 : vector<8x128xf32>
    %106 = arith.addf %101, %105 : vector<8x128xf32>
    %cst_43 = arith.constant 5.000000e+00 : f32
    %107 = vector.broadcast %cst_43 : f32 to vector<8x128xf32>
    %108 = arith.addf %27, %107 : vector<8x128xf32>
    %cst_44 = arith.constant 12.5073433 : f32
    %109 = vector.broadcast %cst_44 : f32 to vector<8x128xf32>
    %110 = arith.divf %109, %108 : vector<8x128xf32>
    %111 = arith.addf %106, %110 : vector<8x128xf32>
    %cst_45 = arith.constant 6.000000e+00 : f32
    %112 = vector.broadcast %cst_45 : f32 to vector<8x128xf32>
    %113 = arith.addf %27, %112 : vector<8x128xf32>
    %cst_46 = arith.constant -0.138571098 : f32
    %114 = vector.broadcast %cst_46 : f32 to vector<8x128xf32>
    %115 = arith.divf %114, %113 : vector<8x128xf32>
    %116 = arith.addf %111, %115 : vector<8x128xf32>
    %cst_47 = arith.constant 7.000000e+00 : f32
    %117 = vector.broadcast %cst_47 : f32 to vector<8x128xf32>
    %118 = arith.addf %27, %117 : vector<8x128xf32>
    %cst_48 = arith.constant 9.98436917E-6 : f32
    %119 = vector.broadcast %cst_48 : f32 to vector<8x128xf32>
    %120 = arith.divf %119, %118 : vector<8x128xf32>
    %121 = arith.addf %116, %120 : vector<8x128xf32>
    %cst_49 = arith.constant 8.000000e+00 : f32
    %122 = vector.broadcast %cst_49 : f32 to vector<8x128xf32>
    %123 = arith.addf %27, %122 : vector<8x128xf32>
    %cst_50 = arith.constant 1.50563267E-7 : f32
    %124 = vector.broadcast %cst_50 : f32 to vector<8x128xf32>
    %125 = arith.divf %124, %123 : vector<8x128xf32>
    %126 = arith.addf %121, %125 : vector<8x128xf32>
    %cst_51 = arith.constant 7.000000e+00 : f32
    %127 = vector.broadcast %cst_51 : f32 to vector<8x128xf32>
    %128 = arith.addf %27, %127 : vector<8x128xf32>
    %cst_52 = arith.constant 5.000000e-01 : f32
    %129 = vector.broadcast %cst_52 : f32 to vector<8x128xf32>
    %130 = arith.addf %128, %129 : vector<8x128xf32>
    %cst_53 = arith.constant 5.000000e-01 : f32
    %131 = vector.broadcast %cst_53 : f32 to vector<8x128xf32>
    %132 = arith.addf %27, %131 : vector<8x128xf32>
    %133 = math.log %130 : vector<8x128xf32>
    %134 = arith.mulf %132, %133 : vector<8x128xf32>
    %cst_54 = arith.constant 0.918938517 : f32
    %135 = vector.broadcast %cst_54 : f32 to vector<8x128xf32>
    %136 = arith.addf %135, %134 : vector<8x128xf32>
    %137 = arith.subf %136, %130 : vector<8x128xf32>
    %138 = math.log %126 : vector<8x128xf32>
    %139 = arith.addf %137, %138 : vector<8x128xf32>
    %140 = math.log %27 : vector<8x128xf32>
    %141 = arith.subf %139, %140 : vector<8x128xf32>
    %cst_55 = arith.constant 5.000000e-01 : f32
    %142 = vector.broadcast %cst_55 : f32 to vector<8x128xf32>
    %143 = arith.addf %14, %142 : vector<8x128xf32>
    %cst_56 = arith.constant 1.000000e+00 : f32
    %144 = vector.broadcast %cst_56 : f32 to vector<8x128xf32>
    %cst_57 = arith.constant 1.000000e+00 : f32
    %145 = vector.broadcast %cst_57 : f32 to vector<8x128xf32>
    %146 = arith.addf %143, %145 : vector<8x128xf32>
    %cst_58 = arith.constant 676.520386 : f32
    %147 = vector.broadcast %cst_58 : f32 to vector<8x128xf32>
    %148 = arith.divf %147, %146 : vector<8x128xf32>
    %149 = arith.addf %144, %148 : vector<8x128xf32>
    %cst_59 = arith.constant 2.000000e+00 : f32
    %150 = vector.broadcast %cst_59 : f32 to vector<8x128xf32>
    %151 = arith.addf %143, %150 : vector<8x128xf32>
    %cst_60 = arith.constant -1259.13916 : f32
    %152 = vector.broadcast %cst_60 : f32 to vector<8x128xf32>
    %153 = arith.divf %152, %151 : vector<8x128xf32>
    %154 = arith.addf %149, %153 : vector<8x128xf32>
    %cst_61 = arith.constant 3.000000e+00 : f32
    %155 = vector.broadcast %cst_61 : f32 to vector<8x128xf32>
    %156 = arith.addf %143, %155 : vector<8x128xf32>
    %cst_62 = arith.constant 771.323425 : f32
    %157 = vector.broadcast %cst_62 : f32 to vector<8x128xf32>
    %158 = arith.divf %157, %156 : vector<8x128xf32>
    %159 = arith.addf %154, %158 : vector<8x128xf32>
    %cst_63 = arith.constant 4.000000e+00 : f32
    %160 = vector.broadcast %cst_63 : f32 to vector<8x128xf32>
    %161 = arith.addf %143, %160 : vector<8x128xf32>
    %cst_64 = arith.constant -176.615036 : f32
    %162 = vector.broadcast %cst_64 : f32 to vector<8x128xf32>
    %163 = arith.divf %162, %161 : vector<8x128xf32>
    %164 = arith.addf %159, %163 : vector<8x128xf32>
    %cst_65 = arith.constant 5.000000e+00 : f32
    %165 = vector.broadcast %cst_65 : f32 to vector<8x128xf32>
    %166 = arith.addf %143, %165 : vector<8x128xf32>
    %cst_66 = arith.constant 12.5073433 : f32
    %167 = vector.broadcast %cst_66 : f32 to vector<8x128xf32>
    %168 = arith.divf %167, %166 : vector<8x128xf32>
    %169 = arith.addf %164, %168 : vector<8x128xf32>
    %cst_67 = arith.constant 6.000000e+00 : f32
    %170 = vector.broadcast %cst_67 : f32 to vector<8x128xf32>
    %171 = arith.addf %143, %170 : vector<8x128xf32>
    %cst_68 = arith.constant -0.138571098 : f32
    %172 = vector.broadcast %cst_68 : f32 to vector<8x128xf32>
    %173 = arith.divf %172, %171 : vector<8x128xf32>
    %174 = arith.addf %169, %173 : vector<8x128xf32>
    %cst_69 = arith.constant 7.000000e+00 : f32
    %175 = vector.broadcast %cst_69 : f32 to vector<8x128xf32>
    %176 = arith.addf %143, %175 : vector<8x128xf32>
    %cst_70 = arith.constant 9.98436917E-6 : f32
    %177 = vector.broadcast %cst_70 : f32 to vector<8x128xf32>
    %178 = arith.divf %177, %176 : vector<8x128xf32>
    %179 = arith.addf %174, %178 : vector<8x128xf32>
    %cst_71 = arith.constant 8.000000e+00 : f32
    %180 = vector.broadcast %cst_71 : f32 to vector<8x128xf32>
    %181 = arith.addf %143, %180 : vector<8x128xf32>
    %cst_72 = arith.constant 1.50563267E-7 : f32
    %182 = vector.broadcast %cst_72 : f32 to vector<8x128xf32>
    %183 = arith.divf %182, %181 : vector<8x128xf32>
    %184 = arith.addf %179, %183 : vector<8x128xf32>
    %cst_73 = arith.constant 7.000000e+00 : f32
    %185 = vector.broadcast %cst_73 : f32 to vector<8x128xf32>
    %186 = arith.addf %143, %185 : vector<8x128xf32>
    %cst_74 = arith.constant 5.000000e-01 : f32
    %187 = vector.broadcast %cst_74 : f32 to vector<8x128xf32>
    %188 = arith.addf %186, %187 : vector<8x128xf32>
    %cst_75 = arith.constant 5.000000e-01 : f32
    %189 = vector.broadcast %cst_75 : f32 to vector<8x128xf32>
    %190 = arith.addf %143, %189 : vector<8x128xf32>
    %191 = math.log %188 : vector<8x128xf32>
    %192 = arith.mulf %190, %191 : vector<8x128xf32>
    %cst_76 = arith.constant 0.918938517 : f32
    %193 = vector.broadcast %cst_76 : f32 to vector<8x128xf32>
    %194 = arith.addf %193, %192 : vector<8x128xf32>
    %195 = arith.subf %194, %188 : vector<8x128xf32>
    %196 = math.log %184 : vector<8x128xf32>
    %197 = arith.addf %195, %196 : vector<8x128xf32>
    %198 = math.log %143 : vector<8x128xf32>
    %199 = arith.subf %197, %198 : vector<8x128xf32>
    %200 = math.log %20 : vector<8x128xf32>
    %201 = math.log %23 : vector<8x128xf32>
    %cst_77 = arith.constant 0.693147182 : f32
    %202 = vector.broadcast %cst_77 : f32 to vector<8x128xf32>
    %203 = arith.addf %200, %202 : vector<8x128xf32>
    %204 = arith.mulf %14, %200 : vector<8x128xf32>
    %205 = arith.subf %204, %20 : vector<8x128xf32>
    %206 = arith.subf %205, %84 : vector<8x128xf32>
    %207 = math.exp %206 : vector<8x128xf32>
    %cst_78 = arith.constant 1.000000e+00 : f32
    %208 = vector.broadcast %cst_78 : f32 to vector<8x128xf32>
    %209 = arith.divf %208, %14 : vector<8x128xf32>
    %c0_i32 = arith.constant 0 : i32
    %c12_i32 = arith.constant 12 : i32
    %210 = arith.addi %c0_i32, %c12_i32 : i32
    %c1_i32 = arith.constant 1 : i32
    %211:2 = scf.for %arg6 = %c0_i32 to %210 step %c1_i32 iter_args(%arg7 = %209, %arg8 = %209) -> (vector<8x128xf32>, vector<8x128xf32>)  : i32 {
      %c4_i32 = arith.constant 4 : i32
      %368 = arith.muli %arg6, %c4_i32 : i32
      %c0_i32_145 = arith.constant 0 : i32
      %369 = arith.addi %368, %c0_i32_145 : i32
      %c1_i32_146 = arith.constant 1 : i32
      %370 = arith.addi %369, %c1_i32_146 : i32
      %371 = arith.sitofp %370 : i32 to f32
      %372 = arith.mulf %arg7, %20 : vector<8x128xf32>
      %373 = vector.broadcast %371 : f32 to vector<8x128xf32>
      %374 = arith.addf %14, %373 : vector<8x128xf32>
      %375 = tpu.reciprocal %374 {approx = true} : vector<8x128xf32> -> vector<8x128xf32>
      %376 = arith.mulf %372, %375 : vector<8x128xf32>
      %377 = arith.addf %arg8, %376 : vector<8x128xf32>
      %c4_i32_147 = arith.constant 4 : i32
      %378 = arith.muli %arg6, %c4_i32_147 : i32
      %c1_i32_148 = arith.constant 1 : i32
      %379 = arith.addi %378, %c1_i32_148 : i32
      %c1_i32_149 = arith.constant 1 : i32
      %380 = arith.addi %379, %c1_i32_149 : i32
      %381 = arith.sitofp %380 : i32 to f32
      %382 = arith.mulf %376, %20 : vector<8x128xf32>
      %383 = vector.broadcast %381 : f32 to vector<8x128xf32>
      %384 = arith.addf %14, %383 : vector<8x128xf32>
      %385 = tpu.reciprocal %384 {approx = true} : vector<8x128xf32> -> vector<8x128xf32>
      %386 = arith.mulf %382, %385 : vector<8x128xf32>
      %387 = arith.addf %377, %386 : vector<8x128xf32>
      %c4_i32_150 = arith.constant 4 : i32
      %388 = arith.muli %arg6, %c4_i32_150 : i32
      %c2_i32 = arith.constant 2 : i32
      %389 = arith.addi %388, %c2_i32 : i32
      %c1_i32_151 = arith.constant 1 : i32
      %390 = arith.addi %389, %c1_i32_151 : i32
      %391 = arith.sitofp %390 : i32 to f32
      %392 = arith.mulf %386, %20 : vector<8x128xf32>
      %393 = vector.broadcast %391 : f32 to vector<8x128xf32>
      %394 = arith.addf %14, %393 : vector<8x128xf32>
      %395 = tpu.reciprocal %394 {approx = true} : vector<8x128xf32> -> vector<8x128xf32>
      %396 = arith.mulf %392, %395 : vector<8x128xf32>
      %397 = arith.addf %387, %396 : vector<8x128xf32>
      %c4_i32_152 = arith.constant 4 : i32
      %398 = arith.muli %arg6, %c4_i32_152 : i32
      %c3_i32 = arith.constant 3 : i32
      %399 = arith.addi %398, %c3_i32 : i32
      %c1_i32_153 = arith.constant 1 : i32
      %400 = arith.addi %399, %c1_i32_153 : i32
      %401 = arith.sitofp %400 : i32 to f32
      %402 = arith.mulf %396, %20 : vector<8x128xf32>
      %403 = vector.broadcast %401 : f32 to vector<8x128xf32>
      %404 = arith.addf %14, %403 : vector<8x128xf32>
      %405 = tpu.reciprocal %404 {approx = true} : vector<8x128xf32> -> vector<8x128xf32>
      %406 = arith.mulf %402, %405 : vector<8x128xf32>
      %407 = arith.addf %397, %406 : vector<8x128xf32>
      scf.yield %406, %407 : vector<8x128xf32>, vector<8x128xf32>
    }
    %c12_i32_79 = arith.constant 12 : i32
    %212 = arith.mulf %211#1, %207 : vector<8x128xf32>
    %cst_80 = arith.constant 1.000000e+00 : f32
    %213 = vector.broadcast %cst_80 : f32 to vector<8x128xf32>
    %214 = arith.addf %20, %213 : vector<8x128xf32>
    %215 = arith.subf %214, %14 : vector<8x128xf32>
    %216 = math.absf %215 : vector<8x128xf32>
    %cst_81 = arith.constant 1.000000e-30 : f32
    %217 = vector.broadcast %cst_81 : f32 to vector<8x128xf32>
    %218 = arith.cmpf olt, %216, %217 : vector<8x128xf32>
    %cst_82 = arith.constant 1.000000e-30 : f32
    %219 = vector.broadcast %cst_82 : f32 to vector<8x128xf32>
    %220 = arith.select %218, %219, %215 : vector<8x128xi1>, vector<8x128xf32>
    %221 = tpu.reciprocal %220 {approx = true} : vector<8x128xf32> -> vector<8x128xf32>
    %222 = arith.mulf %220, %221 : vector<8x128xf32>
    %cst_83 = arith.constant 2.000000e+00 : f32
    %223 = vector.broadcast %cst_83 : f32 to vector<8x128xf32>
    %224 = arith.subf %223, %222 : vector<8x128xf32>
    %225 = arith.mulf %221, %224 : vector<8x128xf32>
    %cst_84 = arith.constant 1.000000e+30 : f32
    %226 = vector.broadcast %cst_84 : f32 to vector<8x128xf32>
    %c0_i32_85 = arith.constant 0 : i32
    %c12_i32_86 = arith.constant 12 : i32
    %227 = arith.addi %c0_i32_85, %c12_i32_86 : i32
    %c1_i32_87 = arith.constant 1 : i32
    %228:3 = scf.for %arg6 = %c0_i32_85 to %227 step %c1_i32_87 iter_args(%arg7 = %226, %arg8 = %225, %arg9 = %225) -> (vector<8x128xf32>, vector<8x128xf32>, vector<8x128xf32>)  : i32 {
      %c4_i32 = arith.constant 4 : i32
      %368 = arith.muli %arg6, %c4_i32 : i32
      %c0_i32_145 = arith.constant 0 : i32
      %369 = arith.addi %368, %c0_i32_145 : i32
      %c1_i32_146 = arith.constant 1 : i32
      %370 = arith.addi %369, %c1_i32_146 : i32
      %371 = arith.sitofp %370 : i32 to f32
      %372 = vector.broadcast %371 : f32 to vector<8x128xf32>
      %373 = arith.subf %14, %372 : vector<8x128xf32>
      %374 = vector.broadcast %371 : f32 to vector<8x128xf32>
      %375 = arith.mulf %374, %373 : vector<8x128xf32>
      %cst_147 = arith.constant 2.000000e+00 : f32
      %376 = arith.mulf %cst_147, %371 : f32
      %377 = vector.broadcast %376 : f32 to vector<8x128xf32>
      %378 = arith.addf %215, %377 : vector<8x128xf32>
      %379 = arith.mulf %375, %arg8 : vector<8x128xf32>
      %380 = arith.addf %379, %378 : vector<8x128xf32>
      %381 = math.absf %380 : vector<8x128xf32>
      %cst_148 = arith.constant 1.000000e-30 : f32
      %382 = vector.broadcast %cst_148 : f32 to vector<8x128xf32>
      %383 = arith.cmpf olt, %381, %382 : vector<8x128xf32>
      %cst_149 = arith.constant 1.000000e-30 : f32
      %384 = vector.broadcast %cst_149 : f32 to vector<8x128xf32>
      %385 = arith.select %383, %384, %380 : vector<8x128xi1>, vector<8x128xf32>
      %386 = tpu.reciprocal %arg7 {approx = true} : vector<8x128xf32> -> vector<8x128xf32>
      %387 = arith.mulf %arg7, %386 : vector<8x128xf32>
      %cst_150 = arith.constant 2.000000e+00 : f32
      %388 = vector.broadcast %cst_150 : f32 to vector<8x128xf32>
      %389 = arith.subf %388, %387 : vector<8x128xf32>
      %390 = arith.mulf %386, %389 : vector<8x128xf32>
      %391 = arith.mulf %375, %390 : vector<8x128xf32>
      %392 = arith.addf %378, %391 : vector<8x128xf32>
      %393 = math.absf %392 : vector<8x128xf32>
      %cst_151 = arith.constant 1.000000e-30 : f32
      %394 = vector.broadcast %cst_151 : f32 to vector<8x128xf32>
      %395 = arith.cmpf olt, %393, %394 : vector<8x128xf32>
      %cst_152 = arith.constant 1.000000e-30 : f32
      %396 = vector.broadcast %cst_152 : f32 to vector<8x128xf32>
      %397 = arith.select %395, %396, %392 : vector<8x128xi1>, vector<8x128xf32>
      %398 = tpu.reciprocal %385 {approx = true} : vector<8x128xf32> -> vector<8x128xf32>
      %399 = arith.mulf %385, %398 : vector<8x128xf32>
      %cst_153 = arith.constant 2.000000e+00 : f32
      %400 = vector.broadcast %cst_153 : f32 to vector<8x128xf32>
      %401 = arith.subf %400, %399 : vector<8x128xf32>
      %402 = arith.mulf %398, %401 : vector<8x128xf32>
      %403 = arith.mulf %402, %397 : vector<8x128xf32>
      %404 = arith.mulf %arg9, %403 : vector<8x128xf32>
      %c4_i32_154 = arith.constant 4 : i32
      %405 = arith.muli %arg6, %c4_i32_154 : i32
      %c1_i32_155 = arith.constant 1 : i32
      %406 = arith.addi %405, %c1_i32_155 : i32
      %c1_i32_156 = arith.constant 1 : i32
      %407 = arith.addi %406, %c1_i32_156 : i32
      %408 = arith.sitofp %407 : i32 to f32
      %409 = vector.broadcast %408 : f32 to vector<8x128xf32>
      %410 = arith.subf %14, %409 : vector<8x128xf32>
      %411 = vector.broadcast %408 : f32 to vector<8x128xf32>
      %412 = arith.mulf %411, %410 : vector<8x128xf32>
      %cst_157 = arith.constant 2.000000e+00 : f32
      %413 = arith.mulf %cst_157, %408 : f32
      %414 = vector.broadcast %413 : f32 to vector<8x128xf32>
      %415 = arith.addf %215, %414 : vector<8x128xf32>
      %416 = arith.mulf %412, %402 : vector<8x128xf32>
      %417 = arith.addf %416, %415 : vector<8x128xf32>
      %418 = math.absf %417 : vector<8x128xf32>
      %cst_158 = arith.constant 1.000000e-30 : f32
      %419 = vector.broadcast %cst_158 : f32 to vector<8x128xf32>
      %420 = arith.cmpf olt, %418, %419 : vector<8x128xf32>
      %cst_159 = arith.constant 1.000000e-30 : f32
      %421 = vector.broadcast %cst_159 : f32 to vector<8x128xf32>
      %422 = arith.select %420, %421, %417 : vector<8x128xi1>, vector<8x128xf32>
      %423 = tpu.reciprocal %397 {approx = true} : vector<8x128xf32> -> vector<8x128xf32>
      %424 = arith.mulf %397, %423 : vector<8x128xf32>
      %cst_160 = arith.constant 2.000000e+00 : f32
      %425 = vector.broadcast %cst_160 : f32 to vector<8x128xf32>
      %426 = arith.subf %425, %424 : vector<8x128xf32>
      %427 = arith.mulf %423, %426 : vector<8x128xf32>
      %428 = arith.mulf %412, %427 : vector<8x128xf32>
      %429 = arith.addf %415, %428 : vector<8x128xf32>
      %430 = math.absf %429 : vector<8x128xf32>
      %cst_161 = arith.constant 1.000000e-30 : f32
      %431 = vector.broadcast %cst_161 : f32 to vector<8x128xf32>
      %432 = arith.cmpf olt, %430, %431 : vector<8x128xf32>
      %cst_162 = arith.constant 1.000000e-30 : f32
      %433 = vector.broadcast %cst_162 : f32 to vector<8x128xf32>
      %434 = arith.select %432, %433, %429 : vector<8x128xi1>, vector<8x128xf32>
      %435 = tpu.reciprocal %422 {approx = true} : vector<8x128xf32> -> vector<8x128xf32>
      %436 = arith.mulf %422, %435 : vector<8x128xf32>
      %cst_163 = arith.constant 2.000000e+00 : f32
      %437 = vector.broadcast %cst_163 : f32 to vector<8x128xf32>
      %438 = arith.subf %437, %436 : vector<8x128xf32>
      %439 = arith.mulf %435, %438 : vector<8x128xf32>
      %440 = arith.mulf %439, %434 : vector<8x128xf32>
      %441 = arith.mulf %404, %440 : vector<8x128xf32>
      %c4_i32_164 = arith.constant 4 : i32
      %442 = arith.muli %arg6, %c4_i32_164 : i32
      %c2_i32 = arith.constant 2 : i32
      %443 = arith.addi %442, %c2_i32 : i32
      %c1_i32_165 = arith.constant 1 : i32
      %444 = arith.addi %443, %c1_i32_165 : i32
      %445 = arith.sitofp %444 : i32 to f32
      %446 = vector.broadcast %445 : f32 to vector<8x128xf32>
      %447 = arith.subf %14, %446 : vector<8x128xf32>
      %448 = vector.broadcast %445 : f32 to vector<8x128xf32>
      %449 = arith.mulf %448, %447 : vector<8x128xf32>
      %cst_166 = arith.constant 2.000000e+00 : f32
      %450 = arith.mulf %cst_166, %445 : f32
      %451 = vector.broadcast %450 : f32 to vector<8x128xf32>
      %452 = arith.addf %215, %451 : vector<8x128xf32>
      %453 = arith.mulf %449, %439 : vector<8x128xf32>
      %454 = arith.addf %453, %452 : vector<8x128xf32>
      %455 = math.absf %454 : vector<8x128xf32>
      %cst_167 = arith.constant 1.000000e-30 : f32
      %456 = vector.broadcast %cst_167 : f32 to vector<8x128xf32>
      %457 = arith.cmpf olt, %455, %456 : vector<8x128xf32>
      %cst_168 = arith.constant 1.000000e-30 : f32
      %458 = vector.broadcast %cst_168 : f32 to vector<8x128xf32>
      %459 = arith.select %457, %458, %454 : vector<8x128xi1>, vector<8x128xf32>
      %460 = tpu.reciprocal %434 {approx = true} : vector<8x128xf32> -> vector<8x128xf32>
      %461 = arith.mulf %434, %460 : vector<8x128xf32>
      %cst_169 = arith.constant 2.000000e+00 : f32
      %462 = vector.broadcast %cst_169 : f32 to vector<8x128xf32>
      %463 = arith.subf %462, %461 : vector<8x128xf32>
      %464 = arith.mulf %460, %463 : vector<8x128xf32>
      %465 = arith.mulf %449, %464 : vector<8x128xf32>
      %466 = arith.addf %452, %465 : vector<8x128xf32>
      %467 = math.absf %466 : vector<8x128xf32>
      %cst_170 = arith.constant 1.000000e-30 : f32
      %468 = vector.broadcast %cst_170 : f32 to vector<8x128xf32>
      %469 = arith.cmpf olt, %467, %468 : vector<8x128xf32>
      %cst_171 = arith.constant 1.000000e-30 : f32
      %470 = vector.broadcast %cst_171 : f32 to vector<8x128xf32>
      %471 = arith.select %469, %470, %466 : vector<8x128xi1>, vector<8x128xf32>
      %472 = tpu.reciprocal %459 {approx = true} : vector<8x128xf32> -> vector<8x128xf32>
      %473 = arith.mulf %459, %472 : vector<8x128xf32>
      %cst_172 = arith.constant 2.000000e+00 : f32
      %474 = vector.broadcast %cst_172 : f32 to vector<8x128xf32>
      %475 = arith.subf %474, %473 : vector<8x128xf32>
      %476 = arith.mulf %472, %475 : vector<8x128xf32>
      %477 = arith.mulf %476, %471 : vector<8x128xf32>
      %478 = arith.mulf %441, %477 : vector<8x128xf32>
      %c4_i32_173 = arith.constant 4 : i32
      %479 = arith.muli %arg6, %c4_i32_173 : i32
      %c3_i32 = arith.constant 3 : i32
      %480 = arith.addi %479, %c3_i32 : i32
      %c1_i32_174 = arith.constant 1 : i32
      %481 = arith.addi %480, %c1_i32_174 : i32
      %482 = arith.sitofp %481 : i32 to f32
      %483 = vector.broadcast %482 : f32 to vector<8x128xf32>
      %484 = arith.subf %14, %483 : vector<8x128xf32>
      %485 = vector.broadcast %482 : f32 to vector<8x128xf32>
      %486 = arith.mulf %485, %484 : vector<8x128xf32>
      %cst_175 = arith.constant 2.000000e+00 : f32
      %487 = arith.mulf %cst_175, %482 : f32
      %488 = vector.broadcast %487 : f32 to vector<8x128xf32>
      %489 = arith.addf %215, %488 : vector<8x128xf32>
      %490 = arith.mulf %486, %476 : vector<8x128xf32>
      %491 = arith.addf %490, %489 : vector<8x128xf32>
      %492 = math.absf %491 : vector<8x128xf32>
      %cst_176 = arith.constant 1.000000e-30 : f32
      %493 = vector.broadcast %cst_176 : f32 to vector<8x128xf32>
      %494 = arith.cmpf olt, %492, %493 : vector<8x128xf32>
      %cst_177 = arith.constant 1.000000e-30 : f32
      %495 = vector.broadcast %cst_177 : f32 to vector<8x128xf32>
      %496 = arith.select %494, %495, %491 : vector<8x128xi1>, vector<8x128xf32>
      %497 = tpu.reciprocal %471 {approx = true} : vector<8x128xf32> -> vector<8x128xf32>
      %498 = arith.mulf %471, %497 : vector<8x128xf32>
      %cst_178 = arith.constant 2.000000e+00 : f32
      %499 = vector.broadcast %cst_178 : f32 to vector<8x128xf32>
      %500 = arith.subf %499, %498 : vector<8x128xf32>
      %501 = arith.mulf %497, %500 : vector<8x128xf32>
      %502 = arith.mulf %486, %501 : vector<8x128xf32>
      %503 = arith.addf %489, %502 : vector<8x128xf32>
      %504 = math.absf %503 : vector<8x128xf32>
      %cst_179 = arith.constant 1.000000e-30 : f32
      %505 = vector.broadcast %cst_179 : f32 to vector<8x128xf32>
      %506 = arith.cmpf olt, %504, %505 : vector<8x128xf32>
      %cst_180 = arith.constant 1.000000e-30 : f32
      %507 = vector.broadcast %cst_180 : f32 to vector<8x128xf32>
      %508 = arith.select %506, %507, %503 : vector<8x128xi1>, vector<8x128xf32>
      %509 = tpu.reciprocal %496 {approx = true} : vector<8x128xf32> -> vector<8x128xf32>
      %510 = arith.mulf %496, %509 : vector<8x128xf32>
      %cst_181 = arith.constant 2.000000e+00 : f32
      %511 = vector.broadcast %cst_181 : f32 to vector<8x128xf32>
      %512 = arith.subf %511, %510 : vector<8x128xf32>
      %513 = arith.mulf %509, %512 : vector<8x128xf32>
      %514 = arith.mulf %513, %508 : vector<8x128xf32>
      %515 = arith.mulf %478, %514 : vector<8x128xf32>
      scf.yield %508, %513, %515 : vector<8x128xf32>, vector<8x128xf32>, vector<8x128xf32>
    }
    %c12_i32_88 = arith.constant 12 : i32
    %229 = arith.mulf %207, %228#2 : vector<8x128xf32>
    %cst_89 = arith.constant 1.000000e+00 : f32
    %230 = vector.broadcast %cst_89 : f32 to vector<8x128xf32>
    %231 = arith.subf %230, %229 : vector<8x128xf32>
    %cst_90 = arith.constant 1.000000e+00 : f32
    %232 = vector.broadcast %cst_90 : f32 to vector<8x128xf32>
    %233 = arith.addf %14, %232 : vector<8x128xf32>
    %234 = arith.cmpf olt, %20, %233 : vector<8x128xf32>
    %235 = arith.select %234, %212, %231 : vector<8x128xi1>, vector<8x128xf32>
    %cst_91 = arith.constant 0.000000e+00 : f32
    %cst_92 = arith.constant 1.000000e+00 : f32
    %236 = vector.broadcast %cst_91 : f32 to vector<8x128xf32>
    %237 = arith.maximumf %236, %235 : vector<8x128xf32>
    %238 = vector.broadcast %cst_92 : f32 to vector<8x128xf32>
    %239 = arith.minimumf %238, %237 : vector<8x128xf32>
    %240 = arith.mulf %14, %201 : vector<8x128xf32>
    %241 = arith.subf %240, %23 : vector<8x128xf32>
    %242 = arith.subf %241, %84 : vector<8x128xf32>
    %243 = math.exp %242 : vector<8x128xf32>
    %cst_93 = arith.constant 1.000000e+00 : f32
    %244 = vector.broadcast %cst_93 : f32 to vector<8x128xf32>
    %245 = arith.divf %244, %14 : vector<8x128xf32>
    %c0_i32_94 = arith.constant 0 : i32
    %c12_i32_95 = arith.constant 12 : i32
    %246 = arith.addi %c0_i32_94, %c12_i32_95 : i32
    %c1_i32_96 = arith.constant 1 : i32
    %247:2 = scf.for %arg6 = %c0_i32_94 to %246 step %c1_i32_96 iter_args(%arg7 = %245, %arg8 = %245) -> (vector<8x128xf32>, vector<8x128xf32>)  : i32 {
      %c4_i32 = arith.constant 4 : i32
      %368 = arith.muli %arg6, %c4_i32 : i32
      %c0_i32_145 = arith.constant 0 : i32
      %369 = arith.addi %368, %c0_i32_145 : i32
      %c1_i32_146 = arith.constant 1 : i32
      %370 = arith.addi %369, %c1_i32_146 : i32
      %371 = arith.sitofp %370 : i32 to f32
      %372 = arith.mulf %arg7, %23 : vector<8x128xf32>
      %373 = vector.broadcast %371 : f32 to vector<8x128xf32>
      %374 = arith.addf %14, %373 : vector<8x128xf32>
      %375 = tpu.reciprocal %374 {approx = true} : vector<8x128xf32> -> vector<8x128xf32>
      %376 = arith.mulf %372, %375 : vector<8x128xf32>
      %377 = arith.addf %arg8, %376 : vector<8x128xf32>
      %c4_i32_147 = arith.constant 4 : i32
      %378 = arith.muli %arg6, %c4_i32_147 : i32
      %c1_i32_148 = arith.constant 1 : i32
      %379 = arith.addi %378, %c1_i32_148 : i32
      %c1_i32_149 = arith.constant 1 : i32
      %380 = arith.addi %379, %c1_i32_149 : i32
      %381 = arith.sitofp %380 : i32 to f32
      %382 = arith.mulf %376, %23 : vector<8x128xf32>
      %383 = vector.broadcast %381 : f32 to vector<8x128xf32>
      %384 = arith.addf %14, %383 : vector<8x128xf32>
      %385 = tpu.reciprocal %384 {approx = true} : vector<8x128xf32> -> vector<8x128xf32>
      %386 = arith.mulf %382, %385 : vector<8x128xf32>
      %387 = arith.addf %377, %386 : vector<8x128xf32>
      %c4_i32_150 = arith.constant 4 : i32
      %388 = arith.muli %arg6, %c4_i32_150 : i32
      %c2_i32 = arith.constant 2 : i32
      %389 = arith.addi %388, %c2_i32 : i32
      %c1_i32_151 = arith.constant 1 : i32
      %390 = arith.addi %389, %c1_i32_151 : i32
      %391 = arith.sitofp %390 : i32 to f32
      %392 = arith.mulf %386, %23 : vector<8x128xf32>
      %393 = vector.broadcast %391 : f32 to vector<8x128xf32>
      %394 = arith.addf %14, %393 : vector<8x128xf32>
      %395 = tpu.reciprocal %394 {approx = true} : vector<8x128xf32> -> vector<8x128xf32>
      %396 = arith.mulf %392, %395 : vector<8x128xf32>
      %397 = arith.addf %387, %396 : vector<8x128xf32>
      %c4_i32_152 = arith.constant 4 : i32
      %398 = arith.muli %arg6, %c4_i32_152 : i32
      %c3_i32 = arith.constant 3 : i32
      %399 = arith.addi %398, %c3_i32 : i32
      %c1_i32_153 = arith.constant 1 : i32
      %400 = arith.addi %399, %c1_i32_153 : i32
      %401 = arith.sitofp %400 : i32 to f32
      %402 = arith.mulf %396, %23 : vector<8x128xf32>
      %403 = vector.broadcast %401 : f32 to vector<8x128xf32>
      %404 = arith.addf %14, %403 : vector<8x128xf32>
      %405 = tpu.reciprocal %404 {approx = true} : vector<8x128xf32> -> vector<8x128xf32>
      %406 = arith.mulf %402, %405 : vector<8x128xf32>
      %407 = arith.addf %397, %406 : vector<8x128xf32>
      scf.yield %406, %407 : vector<8x128xf32>, vector<8x128xf32>
    }
    %c12_i32_97 = arith.constant 12 : i32
    %248 = arith.mulf %247#1, %243 : vector<8x128xf32>
    %cst_98 = arith.constant 1.000000e+00 : f32
    %249 = vector.broadcast %cst_98 : f32 to vector<8x128xf32>
    %250 = arith.addf %23, %249 : vector<8x128xf32>
    %251 = arith.subf %250, %14 : vector<8x128xf32>
    %252 = math.absf %251 : vector<8x128xf32>
    %cst_99 = arith.constant 1.000000e-30 : f32
    %253 = vector.broadcast %cst_99 : f32 to vector<8x128xf32>
    %254 = arith.cmpf olt, %252, %253 : vector<8x128xf32>
    %cst_100 = arith.constant 1.000000e-30 : f32
    %255 = vector.broadcast %cst_100 : f32 to vector<8x128xf32>
    %256 = arith.select %254, %255, %251 : vector<8x128xi1>, vector<8x128xf32>
    %257 = tpu.reciprocal %256 {approx = true} : vector<8x128xf32> -> vector<8x128xf32>
    %258 = arith.mulf %256, %257 : vector<8x128xf32>
    %cst_101 = arith.constant 2.000000e+00 : f32
    %259 = vector.broadcast %cst_101 : f32 to vector<8x128xf32>
    %260 = arith.subf %259, %258 : vector<8x128xf32>
    %261 = arith.mulf %257, %260 : vector<8x128xf32>
    %cst_102 = arith.constant 1.000000e+30 : f32
    %262 = vector.broadcast %cst_102 : f32 to vector<8x128xf32>
    %c0_i32_103 = arith.constant 0 : i32
    %c12_i32_104 = arith.constant 12 : i32
    %263 = arith.addi %c0_i32_103, %c12_i32_104 : i32
    %c1_i32_105 = arith.constant 1 : i32
    %264:3 = scf.for %arg6 = %c0_i32_103 to %263 step %c1_i32_105 iter_args(%arg7 = %262, %arg8 = %261, %arg9 = %261) -> (vector<8x128xf32>, vector<8x128xf32>, vector<8x128xf32>)  : i32 {
      %c4_i32 = arith.constant 4 : i32
      %368 = arith.muli %arg6, %c4_i32 : i32
      %c0_i32_145 = arith.constant 0 : i32
      %369 = arith.addi %368, %c0_i32_145 : i32
      %c1_i32_146 = arith.constant 1 : i32
      %370 = arith.addi %369, %c1_i32_146 : i32
      %371 = arith.sitofp %370 : i32 to f32
      %372 = vector.broadcast %371 : f32 to vector<8x128xf32>
      %373 = arith.subf %14, %372 : vector<8x128xf32>
      %374 = vector.broadcast %371 : f32 to vector<8x128xf32>
      %375 = arith.mulf %374, %373 : vector<8x128xf32>
      %cst_147 = arith.constant 2.000000e+00 : f32
      %376 = arith.mulf %cst_147, %371 : f32
      %377 = vector.broadcast %376 : f32 to vector<8x128xf32>
      %378 = arith.addf %251, %377 : vector<8x128xf32>
      %379 = arith.mulf %375, %arg8 : vector<8x128xf32>
      %380 = arith.addf %379, %378 : vector<8x128xf32>
      %381 = math.absf %380 : vector<8x128xf32>
      %cst_148 = arith.constant 1.000000e-30 : f32
      %382 = vector.broadcast %cst_148 : f32 to vector<8x128xf32>
      %383 = arith.cmpf olt, %381, %382 : vector<8x128xf32>
      %cst_149 = arith.constant 1.000000e-30 : f32
      %384 = vector.broadcast %cst_149 : f32 to vector<8x128xf32>
      %385 = arith.select %383, %384, %380 : vector<8x128xi1>, vector<8x128xf32>
      %386 = tpu.reciprocal %arg7 {approx = true} : vector<8x128xf32> -> vector<8x128xf32>
      %387 = arith.mulf %arg7, %386 : vector<8x128xf32>
      %cst_150 = arith.constant 2.000000e+00 : f32
      %388 = vector.broadcast %cst_150 : f32 to vector<8x128xf32>
      %389 = arith.subf %388, %387 : vector<8x128xf32>
      %390 = arith.mulf %386, %389 : vector<8x128xf32>
      %391 = arith.mulf %375, %390 : vector<8x128xf32>
      %392 = arith.addf %378, %391 : vector<8x128xf32>
      %393 = math.absf %392 : vector<8x128xf32>
      %cst_151 = arith.constant 1.000000e-30 : f32
      %394 = vector.broadcast %cst_151 : f32 to vector<8x128xf32>
      %395 = arith.cmpf olt, %393, %394 : vector<8x128xf32>
      %cst_152 = arith.constant 1.000000e-30 : f32
      %396 = vector.broadcast %cst_152 : f32 to vector<8x128xf32>
      %397 = arith.select %395, %396, %392 : vector<8x128xi1>, vector<8x128xf32>
      %398 = tpu.reciprocal %385 {approx = true} : vector<8x128xf32> -> vector<8x128xf32>
      %399 = arith.mulf %385, %398 : vector<8x128xf32>
      %cst_153 = arith.constant 2.000000e+00 : f32
      %400 = vector.broadcast %cst_153 : f32 to vector<8x128xf32>
      %401 = arith.subf %400, %399 : vector<8x128xf32>
      %402 = arith.mulf %398, %401 : vector<8x128xf32>
      %403 = arith.mulf %402, %397 : vector<8x128xf32>
      %404 = arith.mulf %arg9, %403 : vector<8x128xf32>
      %c4_i32_154 = arith.constant 4 : i32
      %405 = arith.muli %arg6, %c4_i32_154 : i32
      %c1_i32_155 = arith.constant 1 : i32
      %406 = arith.addi %405, %c1_i32_155 : i32
      %c1_i32_156 = arith.constant 1 : i32
      %407 = arith.addi %406, %c1_i32_156 : i32
      %408 = arith.sitofp %407 : i32 to f32
      %409 = vector.broadcast %408 : f32 to vector<8x128xf32>
      %410 = arith.subf %14, %409 : vector<8x128xf32>
      %411 = vector.broadcast %408 : f32 to vector<8x128xf32>
      %412 = arith.mulf %411, %410 : vector<8x128xf32>
      %cst_157 = arith.constant 2.000000e+00 : f32
      %413 = arith.mulf %cst_157, %408 : f32
      %414 = vector.broadcast %413 : f32 to vector<8x128xf32>
      %415 = arith.addf %251, %414 : vector<8x128xf32>
      %416 = arith.mulf %412, %402 : vector<8x128xf32>
      %417 = arith.addf %416, %415 : vector<8x128xf32>
      %418 = math.absf %417 : vector<8x128xf32>
      %cst_158 = arith.constant 1.000000e-30 : f32
      %419 = vector.broadcast %cst_158 : f32 to vector<8x128xf32>
      %420 = arith.cmpf olt, %418, %419 : vector<8x128xf32>
      %cst_159 = arith.constant 1.000000e-30 : f32
      %421 = vector.broadcast %cst_159 : f32 to vector<8x128xf32>
      %422 = arith.select %420, %421, %417 : vector<8x128xi1>, vector<8x128xf32>
      %423 = tpu.reciprocal %397 {approx = true} : vector<8x128xf32> -> vector<8x128xf32>
      %424 = arith.mulf %397, %423 : vector<8x128xf32>
      %cst_160 = arith.constant 2.000000e+00 : f32
      %425 = vector.broadcast %cst_160 : f32 to vector<8x128xf32>
      %426 = arith.subf %425, %424 : vector<8x128xf32>
      %427 = arith.mulf %423, %426 : vector<8x128xf32>
      %428 = arith.mulf %412, %427 : vector<8x128xf32>
      %429 = arith.addf %415, %428 : vector<8x128xf32>
      %430 = math.absf %429 : vector<8x128xf32>
      %cst_161 = arith.constant 1.000000e-30 : f32
      %431 = vector.broadcast %cst_161 : f32 to vector<8x128xf32>
      %432 = arith.cmpf olt, %430, %431 : vector<8x128xf32>
      %cst_162 = arith.constant 1.000000e-30 : f32
      %433 = vector.broadcast %cst_162 : f32 to vector<8x128xf32>
      %434 = arith.select %432, %433, %429 : vector<8x128xi1>, vector<8x128xf32>
      %435 = tpu.reciprocal %422 {approx = true} : vector<8x128xf32> -> vector<8x128xf32>
      %436 = arith.mulf %422, %435 : vector<8x128xf32>
      %cst_163 = arith.constant 2.000000e+00 : f32
      %437 = vector.broadcast %cst_163 : f32 to vector<8x128xf32>
      %438 = arith.subf %437, %436 : vector<8x128xf32>
      %439 = arith.mulf %435, %438 : vector<8x128xf32>
      %440 = arith.mulf %439, %434 : vector<8x128xf32>
      %441 = arith.mulf %404, %440 : vector<8x128xf32>
      %c4_i32_164 = arith.constant 4 : i32
      %442 = arith.muli %arg6, %c4_i32_164 : i32
      %c2_i32 = arith.constant 2 : i32
      %443 = arith.addi %442, %c2_i32 : i32
      %c1_i32_165 = arith.constant 1 : i32
      %444 = arith.addi %443, %c1_i32_165 : i32
      %445 = arith.sitofp %444 : i32 to f32
      %446 = vector.broadcast %445 : f32 to vector<8x128xf32>
      %447 = arith.subf %14, %446 : vector<8x128xf32>
      %448 = vector.broadcast %445 : f32 to vector<8x128xf32>
      %449 = arith.mulf %448, %447 : vector<8x128xf32>
      %cst_166 = arith.constant 2.000000e+00 : f32
      %450 = arith.mulf %cst_166, %445 : f32
      %451 = vector.broadcast %450 : f32 to vector<8x128xf32>
      %452 = arith.addf %251, %451 : vector<8x128xf32>
      %453 = arith.mulf %449, %439 : vector<8x128xf32>
      %454 = arith.addf %453, %452 : vector<8x128xf32>
      %455 = math.absf %454 : vector<8x128xf32>
      %cst_167 = arith.constant 1.000000e-30 : f32
      %456 = vector.broadcast %cst_167 : f32 to vector<8x128xf32>
      %457 = arith.cmpf olt, %455, %456 : vector<8x128xf32>
      %cst_168 = arith.constant 1.000000e-30 : f32
      %458 = vector.broadcast %cst_168 : f32 to vector<8x128xf32>
      %459 = arith.select %457, %458, %454 : vector<8x128xi1>, vector<8x128xf32>
      %460 = tpu.reciprocal %434 {approx = true} : vector<8x128xf32> -> vector<8x128xf32>
      %461 = arith.mulf %434, %460 : vector<8x128xf32>
      %cst_169 = arith.constant 2.000000e+00 : f32
      %462 = vector.broadcast %cst_169 : f32 to vector<8x128xf32>
      %463 = arith.subf %462, %461 : vector<8x128xf32>
      %464 = arith.mulf %460, %463 : vector<8x128xf32>
      %465 = arith.mulf %449, %464 : vector<8x128xf32>
      %466 = arith.addf %452, %465 : vector<8x128xf32>
      %467 = math.absf %466 : vector<8x128xf32>
      %cst_170 = arith.constant 1.000000e-30 : f32
      %468 = vector.broadcast %cst_170 : f32 to vector<8x128xf32>
      %469 = arith.cmpf olt, %467, %468 : vector<8x128xf32>
      %cst_171 = arith.constant 1.000000e-30 : f32
      %470 = vector.broadcast %cst_171 : f32 to vector<8x128xf32>
      %471 = arith.select %469, %470, %466 : vector<8x128xi1>, vector<8x128xf32>
      %472 = tpu.reciprocal %459 {approx = true} : vector<8x128xf32> -> vector<8x128xf32>
      %473 = arith.mulf %459, %472 : vector<8x128xf32>
      %cst_172 = arith.constant 2.000000e+00 : f32
      %474 = vector.broadcast %cst_172 : f32 to vector<8x128xf32>
      %475 = arith.subf %474, %473 : vector<8x128xf32>
      %476 = arith.mulf %472, %475 : vector<8x128xf32>
      %477 = arith.mulf %476, %471 : vector<8x128xf32>
      %478 = arith.mulf %441, %477 : vector<8x128xf32>
      %c4_i32_173 = arith.constant 4 : i32
      %479 = arith.muli %arg6, %c4_i32_173 : i32
      %c3_i32 = arith.constant 3 : i32
      %480 = arith.addi %479, %c3_i32 : i32
      %c1_i32_174 = arith.constant 1 : i32
      %481 = arith.addi %480, %c1_i32_174 : i32
      %482 = arith.sitofp %481 : i32 to f32
      %483 = vector.broadcast %482 : f32 to vector<8x128xf32>
      %484 = arith.subf %14, %483 : vector<8x128xf32>
      %485 = vector.broadcast %482 : f32 to vector<8x128xf32>
      %486 = arith.mulf %485, %484 : vector<8x128xf32>
      %cst_175 = arith.constant 2.000000e+00 : f32
      %487 = arith.mulf %cst_175, %482 : f32
      %488 = vector.broadcast %487 : f32 to vector<8x128xf32>
      %489 = arith.addf %251, %488 : vector<8x128xf32>
      %490 = arith.mulf %486, %476 : vector<8x128xf32>
      %491 = arith.addf %490, %489 : vector<8x128xf32>
      %492 = math.absf %491 : vector<8x128xf32>
      %cst_176 = arith.constant 1.000000e-30 : f32
      %493 = vector.broadcast %cst_176 : f32 to vector<8x128xf32>
      %494 = arith.cmpf olt, %492, %493 : vector<8x128xf32>
      %cst_177 = arith.constant 1.000000e-30 : f32
      %495 = vector.broadcast %cst_177 : f32 to vector<8x128xf32>
      %496 = arith.select %494, %495, %491 : vector<8x128xi1>, vector<8x128xf32>
      %497 = tpu.reciprocal %471 {approx = true} : vector<8x128xf32> -> vector<8x128xf32>
      %498 = arith.mulf %471, %497 : vector<8x128xf32>
      %cst_178 = arith.constant 2.000000e+00 : f32
      %499 = vector.broadcast %cst_178 : f32 to vector<8x128xf32>
      %500 = arith.subf %499, %498 : vector<8x128xf32>
      %501 = arith.mulf %497, %500 : vector<8x128xf32>
      %502 = arith.mulf %486, %501 : vector<8x128xf32>
      %503 = arith.addf %489, %502 : vector<8x128xf32>
      %504 = math.absf %503 : vector<8x128xf32>
      %cst_179 = arith.constant 1.000000e-30 : f32
      %505 = vector.broadcast %cst_179 : f32 to vector<8x128xf32>
      %506 = arith.cmpf olt, %504, %505 : vector<8x128xf32>
      %cst_180 = arith.constant 1.000000e-30 : f32
      %507 = vector.broadcast %cst_180 : f32 to vector<8x128xf32>
      %508 = arith.select %506, %507, %503 : vector<8x128xi1>, vector<8x128xf32>
      %509 = tpu.reciprocal %496 {approx = true} : vector<8x128xf32> -> vector<8x128xf32>
      %510 = arith.mulf %496, %509 : vector<8x128xf32>
      %cst_181 = arith.constant 2.000000e+00 : f32
      %511 = vector.broadcast %cst_181 : f32 to vector<8x128xf32>
      %512 = arith.subf %511, %510 : vector<8x128xf32>
      %513 = arith.mulf %509, %512 : vector<8x128xf32>
      %514 = arith.mulf %513, %508 : vector<8x128xf32>
      %515 = arith.mulf %478, %514 : vector<8x128xf32>
      scf.yield %508, %513, %515 : vector<8x128xf32>, vector<8x128xf32>, vector<8x128xf32>
    }
    %c12_i32_106 = arith.constant 12 : i32
    %265 = arith.mulf %243, %264#2 : vector<8x128xf32>
    %cst_107 = arith.constant 1.000000e+00 : f32
    %266 = vector.broadcast %cst_107 : f32 to vector<8x128xf32>
    %267 = arith.subf %266, %265 : vector<8x128xf32>
    %cst_108 = arith.constant 1.000000e+00 : f32
    %268 = vector.broadcast %cst_108 : f32 to vector<8x128xf32>
    %269 = arith.addf %14, %268 : vector<8x128xf32>
    %270 = arith.cmpf olt, %23, %269 : vector<8x128xf32>
    %271 = arith.select %270, %248, %267 : vector<8x128xi1>, vector<8x128xf32>
    %cst_109 = arith.constant 0.000000e+00 : f32
    %cst_110 = arith.constant 1.000000e+00 : f32
    %272 = vector.broadcast %cst_109 : f32 to vector<8x128xf32>
    %273 = arith.maximumf %272, %271 : vector<8x128xf32>
    %274 = vector.broadcast %cst_110 : f32 to vector<8x128xf32>
    %275 = arith.minimumf %274, %273 : vector<8x128xf32>
    %276 = arith.mulf %27, %203 : vector<8x128xf32>
    %277 = arith.subf %276, %25 : vector<8x128xf32>
    %278 = arith.subf %277, %141 : vector<8x128xf32>
    %279 = math.exp %278 : vector<8x128xf32>
    %cst_111 = arith.constant 1.000000e+00 : f32
    %280 = vector.broadcast %cst_111 : f32 to vector<8x128xf32>
    %281 = arith.divf %280, %27 : vector<8x128xf32>
    %c0_i32_112 = arith.constant 0 : i32
    %c12_i32_113 = arith.constant 12 : i32
    %282 = arith.addi %c0_i32_112, %c12_i32_113 : i32
    %c1_i32_114 = arith.constant 1 : i32
    %283:2 = scf.for %arg6 = %c0_i32_112 to %282 step %c1_i32_114 iter_args(%arg7 = %281, %arg8 = %281) -> (vector<8x128xf32>, vector<8x128xf32>)  : i32 {
      %c4_i32 = arith.constant 4 : i32
      %368 = arith.muli %arg6, %c4_i32 : i32
      %c0_i32_145 = arith.constant 0 : i32
      %369 = arith.addi %368, %c0_i32_145 : i32
      %c1_i32_146 = arith.constant 1 : i32
      %370 = arith.addi %369, %c1_i32_146 : i32
      %371 = arith.sitofp %370 : i32 to f32
      %372 = arith.mulf %arg7, %25 : vector<8x128xf32>
      %373 = vector.broadcast %371 : f32 to vector<8x128xf32>
      %374 = arith.addf %27, %373 : vector<8x128xf32>
      %375 = tpu.reciprocal %374 {approx = true} : vector<8x128xf32> -> vector<8x128xf32>
      %376 = arith.mulf %372, %375 : vector<8x128xf32>
      %377 = arith.addf %arg8, %376 : vector<8x128xf32>
      %c4_i32_147 = arith.constant 4 : i32
      %378 = arith.muli %arg6, %c4_i32_147 : i32
      %c1_i32_148 = arith.constant 1 : i32
      %379 = arith.addi %378, %c1_i32_148 : i32
      %c1_i32_149 = arith.constant 1 : i32
      %380 = arith.addi %379, %c1_i32_149 : i32
      %381 = arith.sitofp %380 : i32 to f32
      %382 = arith.mulf %376, %25 : vector<8x128xf32>
      %383 = vector.broadcast %381 : f32 to vector<8x128xf32>
      %384 = arith.addf %27, %383 : vector<8x128xf32>
      %385 = tpu.reciprocal %384 {approx = true} : vector<8x128xf32> -> vector<8x128xf32>
      %386 = arith.mulf %382, %385 : vector<8x128xf32>
      %387 = arith.addf %377, %386 : vector<8x128xf32>
      %c4_i32_150 = arith.constant 4 : i32
      %388 = arith.muli %arg6, %c4_i32_150 : i32
      %c2_i32 = arith.constant 2 : i32
      %389 = arith.addi %388, %c2_i32 : i32
      %c1_i32_151 = arith.constant 1 : i32
      %390 = arith.addi %389, %c1_i32_151 : i32
      %391 = arith.sitofp %390 : i32 to f32
      %392 = arith.mulf %386, %25 : vector<8x128xf32>
      %393 = vector.broadcast %391 : f32 to vector<8x128xf32>
      %394 = arith.addf %27, %393 : vector<8x128xf32>
      %395 = tpu.reciprocal %394 {approx = true} : vector<8x128xf32> -> vector<8x128xf32>
      %396 = arith.mulf %392, %395 : vector<8x128xf32>
      %397 = arith.addf %387, %396 : vector<8x128xf32>
      %c4_i32_152 = arith.constant 4 : i32
      %398 = arith.muli %arg6, %c4_i32_152 : i32
      %c3_i32 = arith.constant 3 : i32
      %399 = arith.addi %398, %c3_i32 : i32
      %c1_i32_153 = arith.constant 1 : i32
      %400 = arith.addi %399, %c1_i32_153 : i32
      %401 = arith.sitofp %400 : i32 to f32
      %402 = arith.mulf %396, %25 : vector<8x128xf32>
      %403 = vector.broadcast %401 : f32 to vector<8x128xf32>
      %404 = arith.addf %27, %403 : vector<8x128xf32>
      %405 = tpu.reciprocal %404 {approx = true} : vector<8x128xf32> -> vector<8x128xf32>
      %406 = arith.mulf %402, %405 : vector<8x128xf32>
      %407 = arith.addf %397, %406 : vector<8x128xf32>
      scf.yield %406, %407 : vector<8x128xf32>, vector<8x128xf32>
    }
    %c12_i32_115 = arith.constant 12 : i32
    %284 = arith.mulf %283#1, %279 : vector<8x128xf32>
    %cst_116 = arith.constant 1.000000e+00 : f32
    %285 = vector.broadcast %cst_116 : f32 to vector<8x128xf32>
    %286 = arith.addf %25, %285 : vector<8x128xf32>
    %287 = arith.subf %286, %27 : vector<8x128xf32>
    %288 = math.absf %287 : vector<8x128xf32>
    %cst_117 = arith.constant 1.000000e-30 : f32
    %289 = vector.broadcast %cst_117 : f32 to vector<8x128xf32>
    %290 = arith.cmpf olt, %288, %289 : vector<8x128xf32>
    %cst_118 = arith.constant 1.000000e-30 : f32
    %291 = vector.broadcast %cst_118 : f32 to vector<8x128xf32>
    %292 = arith.select %290, %291, %287 : vector<8x128xi1>, vector<8x128xf32>
    %293 = tpu.reciprocal %292 {approx = true} : vector<8x128xf32> -> vector<8x128xf32>
    %294 = arith.mulf %292, %293 : vector<8x128xf32>
    %cst_119 = arith.constant 2.000000e+00 : f32
    %295 = vector.broadcast %cst_119 : f32 to vector<8x128xf32>
    %296 = arith.subf %295, %294 : vector<8x128xf32>
    %297 = arith.mulf %293, %296 : vector<8x128xf32>
    %cst_120 = arith.constant 1.000000e+30 : f32
    %298 = vector.broadcast %cst_120 : f32 to vector<8x128xf32>
    %c0_i32_121 = arith.constant 0 : i32
    %c12_i32_122 = arith.constant 12 : i32
    %299 = arith.addi %c0_i32_121, %c12_i32_122 : i32
    %c1_i32_123 = arith.constant 1 : i32
    %300:3 = scf.for %arg6 = %c0_i32_121 to %299 step %c1_i32_123 iter_args(%arg7 = %298, %arg8 = %297, %arg9 = %297) -> (vector<8x128xf32>, vector<8x128xf32>, vector<8x128xf32>)  : i32 {
      %c4_i32 = arith.constant 4 : i32
      %368 = arith.muli %arg6, %c4_i32 : i32
      %c0_i32_145 = arith.constant 0 : i32
      %369 = arith.addi %368, %c0_i32_145 : i32
      %c1_i32_146 = arith.constant 1 : i32
      %370 = arith.addi %369, %c1_i32_146 : i32
      %371 = arith.sitofp %370 : i32 to f32
      %372 = vector.broadcast %371 : f32 to vector<8x128xf32>
      %373 = arith.subf %27, %372 : vector<8x128xf32>
      %374 = vector.broadcast %371 : f32 to vector<8x128xf32>
      %375 = arith.mulf %374, %373 : vector<8x128xf32>
      %cst_147 = arith.constant 2.000000e+00 : f32
      %376 = arith.mulf %cst_147, %371 : f32
      %377 = vector.broadcast %376 : f32 to vector<8x128xf32>
      %378 = arith.addf %287, %377 : vector<8x128xf32>
      %379 = arith.mulf %375, %arg8 : vector<8x128xf32>
      %380 = arith.addf %379, %378 : vector<8x128xf32>
      %381 = math.absf %380 : vector<8x128xf32>
      %cst_148 = arith.constant 1.000000e-30 : f32
      %382 = vector.broadcast %cst_148 : f32 to vector<8x128xf32>
      %383 = arith.cmpf olt, %381, %382 : vector<8x128xf32>
      %cst_149 = arith.constant 1.000000e-30 : f32
      %384 = vector.broadcast %cst_149 : f32 to vector<8x128xf32>
      %385 = arith.select %383, %384, %380 : vector<8x128xi1>, vector<8x128xf32>
      %386 = tpu.reciprocal %arg7 {approx = true} : vector<8x128xf32> -> vector<8x128xf32>
      %387 = arith.mulf %arg7, %386 : vector<8x128xf32>
      %cst_150 = arith.constant 2.000000e+00 : f32
      %388 = vector.broadcast %cst_150 : f32 to vector<8x128xf32>
      %389 = arith.subf %388, %387 : vector<8x128xf32>
      %390 = arith.mulf %386, %389 : vector<8x128xf32>
      %391 = arith.mulf %375, %390 : vector<8x128xf32>
      %392 = arith.addf %378, %391 : vector<8x128xf32>
      %393 = math.absf %392 : vector<8x128xf32>
      %cst_151 = arith.constant 1.000000e-30 : f32
      %394 = vector.broadcast %cst_151 : f32 to vector<8x128xf32>
      %395 = arith.cmpf olt, %393, %394 : vector<8x128xf32>
      %cst_152 = arith.constant 1.000000e-30 : f32
      %396 = vector.broadcast %cst_152 : f32 to vector<8x128xf32>
      %397 = arith.select %395, %396, %392 : vector<8x128xi1>, vector<8x128xf32>
      %398 = tpu.reciprocal %385 {approx = true} : vector<8x128xf32> -> vector<8x128xf32>
      %399 = arith.mulf %385, %398 : vector<8x128xf32>
      %cst_153 = arith.constant 2.000000e+00 : f32
      %400 = vector.broadcast %cst_153 : f32 to vector<8x128xf32>
      %401 = arith.subf %400, %399 : vector<8x128xf32>
      %402 = arith.mulf %398, %401 : vector<8x128xf32>
      %403 = arith.mulf %402, %397 : vector<8x128xf32>
      %404 = arith.mulf %arg9, %403 : vector<8x128xf32>
      %c4_i32_154 = arith.constant 4 : i32
      %405 = arith.muli %arg6, %c4_i32_154 : i32
      %c1_i32_155 = arith.constant 1 : i32
      %406 = arith.addi %405, %c1_i32_155 : i32
      %c1_i32_156 = arith.constant 1 : i32
      %407 = arith.addi %406, %c1_i32_156 : i32
      %408 = arith.sitofp %407 : i32 to f32
      %409 = vector.broadcast %408 : f32 to vector<8x128xf32>
      %410 = arith.subf %27, %409 : vector<8x128xf32>
      %411 = vector.broadcast %408 : f32 to vector<8x128xf32>
      %412 = arith.mulf %411, %410 : vector<8x128xf32>
      %cst_157 = arith.constant 2.000000e+00 : f32
      %413 = arith.mulf %cst_157, %408 : f32
      %414 = vector.broadcast %413 : f32 to vector<8x128xf32>
      %415 = arith.addf %287, %414 : vector<8x128xf32>
      %416 = arith.mulf %412, %402 : vector<8x128xf32>
      %417 = arith.addf %416, %415 : vector<8x128xf32>
      %418 = math.absf %417 : vector<8x128xf32>
      %cst_158 = arith.constant 1.000000e-30 : f32
      %419 = vector.broadcast %cst_158 : f32 to vector<8x128xf32>
      %420 = arith.cmpf olt, %418, %419 : vector<8x128xf32>
      %cst_159 = arith.constant 1.000000e-30 : f32
      %421 = vector.broadcast %cst_159 : f32 to vector<8x128xf32>
      %422 = arith.select %420, %421, %417 : vector<8x128xi1>, vector<8x128xf32>
      %423 = tpu.reciprocal %397 {approx = true} : vector<8x128xf32> -> vector<8x128xf32>
      %424 = arith.mulf %397, %423 : vector<8x128xf32>
      %cst_160 = arith.constant 2.000000e+00 : f32
      %425 = vector.broadcast %cst_160 : f32 to vector<8x128xf32>
      %426 = arith.subf %425, %424 : vector<8x128xf32>
      %427 = arith.mulf %423, %426 : vector<8x128xf32>
      %428 = arith.mulf %412, %427 : vector<8x128xf32>
      %429 = arith.addf %415, %428 : vector<8x128xf32>
      %430 = math.absf %429 : vector<8x128xf32>
      %cst_161 = arith.constant 1.000000e-30 : f32
      %431 = vector.broadcast %cst_161 : f32 to vector<8x128xf32>
      %432 = arith.cmpf olt, %430, %431 : vector<8x128xf32>
      %cst_162 = arith.constant 1.000000e-30 : f32
      %433 = vector.broadcast %cst_162 : f32 to vector<8x128xf32>
      %434 = arith.select %432, %433, %429 : vector<8x128xi1>, vector<8x128xf32>
      %435 = tpu.reciprocal %422 {approx = true} : vector<8x128xf32> -> vector<8x128xf32>
      %436 = arith.mulf %422, %435 : vector<8x128xf32>
      %cst_163 = arith.constant 2.000000e+00 : f32
      %437 = vector.broadcast %cst_163 : f32 to vector<8x128xf32>
      %438 = arith.subf %437, %436 : vector<8x128xf32>
      %439 = arith.mulf %435, %438 : vector<8x128xf32>
      %440 = arith.mulf %439, %434 : vector<8x128xf32>
      %441 = arith.mulf %404, %440 : vector<8x128xf32>
      %c4_i32_164 = arith.constant 4 : i32
      %442 = arith.muli %arg6, %c4_i32_164 : i32
      %c2_i32 = arith.constant 2 : i32
      %443 = arith.addi %442, %c2_i32 : i32
      %c1_i32_165 = arith.constant 1 : i32
      %444 = arith.addi %443, %c1_i32_165 : i32
      %445 = arith.sitofp %444 : i32 to f32
      %446 = vector.broadcast %445 : f32 to vector<8x128xf32>
      %447 = arith.subf %27, %446 : vector<8x128xf32>
      %448 = vector.broadcast %445 : f32 to vector<8x128xf32>
      %449 = arith.mulf %448, %447 : vector<8x128xf32>
      %cst_166 = arith.constant 2.000000e+00 : f32
      %450 = arith.mulf %cst_166, %445 : f32
      %451 = vector.broadcast %450 : f32 to vector<8x128xf32>
      %452 = arith.addf %287, %451 : vector<8x128xf32>
      %453 = arith.mulf %449, %439 : vector<8x128xf32>
      %454 = arith.addf %453, %452 : vector<8x128xf32>
      %455 = math.absf %454 : vector<8x128xf32>
      %cst_167 = arith.constant 1.000000e-30 : f32
      %456 = vector.broadcast %cst_167 : f32 to vector<8x128xf32>
      %457 = arith.cmpf olt, %455, %456 : vector<8x128xf32>
      %cst_168 = arith.constant 1.000000e-30 : f32
      %458 = vector.broadcast %cst_168 : f32 to vector<8x128xf32>
      %459 = arith.select %457, %458, %454 : vector<8x128xi1>, vector<8x128xf32>
      %460 = tpu.reciprocal %434 {approx = true} : vector<8x128xf32> -> vector<8x128xf32>
      %461 = arith.mulf %434, %460 : vector<8x128xf32>
      %cst_169 = arith.constant 2.000000e+00 : f32
      %462 = vector.broadcast %cst_169 : f32 to vector<8x128xf32>
      %463 = arith.subf %462, %461 : vector<8x128xf32>
      %464 = arith.mulf %460, %463 : vector<8x128xf32>
      %465 = arith.mulf %449, %464 : vector<8x128xf32>
      %466 = arith.addf %452, %465 : vector<8x128xf32>
      %467 = math.absf %466 : vector<8x128xf32>
      %cst_170 = arith.constant 1.000000e-30 : f32
      %468 = vector.broadcast %cst_170 : f32 to vector<8x128xf32>
      %469 = arith.cmpf olt, %467, %468 : vector<8x128xf32>
      %cst_171 = arith.constant 1.000000e-30 : f32
      %470 = vector.broadcast %cst_171 : f32 to vector<8x128xf32>
      %471 = arith.select %469, %470, %466 : vector<8x128xi1>, vector<8x128xf32>
      %472 = tpu.reciprocal %459 {approx = true} : vector<8x128xf32> -> vector<8x128xf32>
      %473 = arith.mulf %459, %472 : vector<8x128xf32>
      %cst_172 = arith.constant 2.000000e+00 : f32
      %474 = vector.broadcast %cst_172 : f32 to vector<8x128xf32>
      %475 = arith.subf %474, %473 : vector<8x128xf32>
      %476 = arith.mulf %472, %475 : vector<8x128xf32>
      %477 = arith.mulf %476, %471 : vector<8x128xf32>
      %478 = arith.mulf %441, %477 : vector<8x128xf32>
      %c4_i32_173 = arith.constant 4 : i32
      %479 = arith.muli %arg6, %c4_i32_173 : i32
      %c3_i32 = arith.constant 3 : i32
      %480 = arith.addi %479, %c3_i32 : i32
      %c1_i32_174 = arith.constant 1 : i32
      %481 = arith.addi %480, %c1_i32_174 : i32
      %482 = arith.sitofp %481 : i32 to f32
      %483 = vector.broadcast %482 : f32 to vector<8x128xf32>
      %484 = arith.subf %27, %483 : vector<8x128xf32>
      %485 = vector.broadcast %482 : f32 to vector<8x128xf32>
      %486 = arith.mulf %485, %484 : vector<8x128xf32>
      %cst_175 = arith.constant 2.000000e+00 : f32
      %487 = arith.mulf %cst_175, %482 : f32
      %488 = vector.broadcast %487 : f32 to vector<8x128xf32>
      %489 = arith.addf %287, %488 : vector<8x128xf32>
      %490 = arith.mulf %486, %476 : vector<8x128xf32>
      %491 = arith.addf %490, %489 : vector<8x128xf32>
      %492 = math.absf %491 : vector<8x128xf32>
      %cst_176 = arith.constant 1.000000e-30 : f32
      %493 = vector.broadcast %cst_176 : f32 to vector<8x128xf32>
      %494 = arith.cmpf olt, %492, %493 : vector<8x128xf32>
      %cst_177 = arith.constant 1.000000e-30 : f32
      %495 = vector.broadcast %cst_177 : f32 to vector<8x128xf32>
      %496 = arith.select %494, %495, %491 : vector<8x128xi1>, vector<8x128xf32>
      %497 = tpu.reciprocal %471 {approx = true} : vector<8x128xf32> -> vector<8x128xf32>
      %498 = arith.mulf %471, %497 : vector<8x128xf32>
      %cst_178 = arith.constant 2.000000e+00 : f32
      %499 = vector.broadcast %cst_178 : f32 to vector<8x128xf32>
      %500 = arith.subf %499, %498 : vector<8x128xf32>
      %501 = arith.mulf %497, %500 : vector<8x128xf32>
      %502 = arith.mulf %486, %501 : vector<8x128xf32>
      %503 = arith.addf %489, %502 : vector<8x128xf32>
      %504 = math.absf %503 : vector<8x128xf32>
      %cst_179 = arith.constant 1.000000e-30 : f32
      %505 = vector.broadcast %cst_179 : f32 to vector<8x128xf32>
      %506 = arith.cmpf olt, %504, %505 : vector<8x128xf32>
      %cst_180 = arith.constant 1.000000e-30 : f32
      %507 = vector.broadcast %cst_180 : f32 to vector<8x128xf32>
      %508 = arith.select %506, %507, %503 : vector<8x128xi1>, vector<8x128xf32>
      %509 = tpu.reciprocal %496 {approx = true} : vector<8x128xf32> -> vector<8x128xf32>
      %510 = arith.mulf %496, %509 : vector<8x128xf32>
      %cst_181 = arith.constant 2.000000e+00 : f32
      %511 = vector.broadcast %cst_181 : f32 to vector<8x128xf32>
      %512 = arith.subf %511, %510 : vector<8x128xf32>
      %513 = arith.mulf %509, %512 : vector<8x128xf32>
      %514 = arith.mulf %513, %508 : vector<8x128xf32>
      %515 = arith.mulf %478, %514 : vector<8x128xf32>
      scf.yield %508, %513, %515 : vector<8x128xf32>, vector<8x128xf32>, vector<8x128xf32>
    }
    %c12_i32_124 = arith.constant 12 : i32
    %301 = arith.mulf %279, %300#2 : vector<8x128xf32>
    %cst_125 = arith.constant 1.000000e+00 : f32
    %302 = vector.broadcast %cst_125 : f32 to vector<8x128xf32>
    %303 = arith.subf %302, %301 : vector<8x128xf32>
    %cst_126 = arith.constant 1.000000e+00 : f32
    %304 = vector.broadcast %cst_126 : f32 to vector<8x128xf32>
    %305 = arith.addf %27, %304 : vector<8x128xf32>
    %306 = arith.cmpf olt, %25, %305 : vector<8x128xf32>
    %307 = arith.select %306, %284, %303 : vector<8x128xi1>, vector<8x128xf32>
    %cst_127 = arith.constant 0.000000e+00 : f32
    %cst_128 = arith.constant 1.000000e+00 : f32
    %308 = vector.broadcast %cst_127 : f32 to vector<8x128xf32>
    %309 = arith.maximumf %308, %307 : vector<8x128xf32>
    %310 = vector.broadcast %cst_128 : f32 to vector<8x128xf32>
    %311 = arith.minimumf %310, %309 : vector<8x128xf32>
    %312 = arith.mulf %14, %200 : vector<8x128xf32>
    %313 = arith.subf %312, %20 : vector<8x128xf32>
    %314 = arith.subf %313, %85 : vector<8x128xf32>
    %315 = math.exp %314 : vector<8x128xf32>
    %316 = arith.subf %239, %315 : vector<8x128xf32>
    %cst_129 = arith.constant 0.000000e+00 : f32
    %cst_130 = arith.constant 1.000000e+00 : f32
    %317 = vector.broadcast %cst_129 : f32 to vector<8x128xf32>
    %318 = arith.maximumf %317, %316 : vector<8x128xf32>
    %319 = vector.broadcast %cst_130 : f32 to vector<8x128xf32>
    %320 = arith.minimumf %319, %318 : vector<8x128xf32>
    %321 = arith.mulf %14, %201 : vector<8x128xf32>
    %322 = arith.subf %321, %23 : vector<8x128xf32>
    %323 = arith.subf %322, %85 : vector<8x128xf32>
    %324 = math.exp %323 : vector<8x128xf32>
    %325 = arith.subf %275, %324 : vector<8x128xf32>
    %cst_131 = arith.constant 0.000000e+00 : f32
    %cst_132 = arith.constant 1.000000e+00 : f32
    %326 = vector.broadcast %cst_131 : f32 to vector<8x128xf32>
    %327 = arith.maximumf %326, %325 : vector<8x128xf32>
    %328 = vector.broadcast %cst_132 : f32 to vector<8x128xf32>
    %329 = arith.minimumf %328, %327 : vector<8x128xf32>
    %cst_133 = arith.constant 0.572364926 : f32
    %330 = vector.broadcast %cst_133 : f32 to vector<8x128xf32>
    %331 = arith.addf %330, %199 : vector<8x128xf32>
    %332 = arith.subf %331, %85 : vector<8x128xf32>
    %333 = math.exp %332 : vector<8x128xf32>
    %cst_134 = arith.constant 2.000000e+00 : f32
    %334 = vector.broadcast %cst_134 : f32 to vector<8x128xf32>
    %335 = arith.mulf %334, %275 : vector<8x128xf32>
    %cst_135 = arith.constant 1.000000e+00 : f32
    %336 = vector.broadcast %cst_135 : f32 to vector<8x128xf32>
    %337 = arith.subf %335, %336 : vector<8x128xf32>
    %338 = arith.mulf %17, %337 : vector<8x128xf32>
    %339 = arith.mulf %14, %15 : vector<8x128xf32>
    %cst_136 = arith.constant 0.318309873 : f32
    %340 = vector.broadcast %cst_136 : f32 to vector<8x128xf32>
    %341 = arith.mulf %339, %340 : vector<8x128xf32>
    %cst_137 = arith.constant 0.000000e+00 : f32
    %342 = vector.broadcast %cst_137 : f32 to vector<8x128xf32>
    %343 = arith.subf %342, %341 : vector<8x128xf32>
    %344 = arith.mulf %343, %333 : vector<8x128xf32>
    %cst_138 = arith.constant 1.000000e+00 : f32
    %345 = vector.broadcast %cst_138 : f32 to vector<8x128xf32>
    %346 = arith.subf %345, %311 : vector<8x128xf32>
    %347 = arith.mulf %344, %346 : vector<8x128xf32>
    %348 = arith.mulf %15, %14 : vector<8x128xf32>
    %cst_139 = arith.constant 2.000000e+00 : f32
    %349 = vector.broadcast %cst_139 : f32 to vector<8x128xf32>
    %350 = arith.mulf %349, %239 : vector<8x128xf32>
    %351 = arith.mulf %350, %320 : vector<8x128xf32>
    %cst_140 = arith.constant 1.000000e+00 : f32
    %352 = vector.broadcast %cst_140 : f32 to vector<8x128xf32>
    %353 = arith.addf %352, %351 : vector<8x128xf32>
    %354 = arith.mulf %239, %239 : vector<8x128xf32>
    %355 = arith.subf %353, %354 : vector<8x128xf32>
    %cst_141 = arith.constant 2.000000e+00 : f32
    %356 = vector.broadcast %cst_141 : f32 to vector<8x128xf32>
    %357 = arith.mulf %356, %329 : vector<8x128xf32>
    %358 = arith.subf %355, %357 : vector<8x128xf32>
    %359 = arith.mulf %348, %358 : vector<8x128xf32>
    %cst_142 = arith.constant 0.000000e+00 : f32
    %360 = vector.broadcast %cst_142 : f32 to vector<8x128xf32>
    %361 = arith.subf %360, %8 : vector<8x128xf32>
    %362 = arith.mulf %361, %239 : vector<8x128xf32>
    %363 = arith.mulf %362, %239 : vector<8x128xf32>
    %364 = arith.addf %338, %347 : vector<8x128xf32>
    %365 = arith.addf %364, %359 : vector<8x128xf32>
    %366 = arith.addf %365, %363 : vector<8x128xf32>
    %c0_143 = arith.constant 0 : index
    %c0_144 = arith.constant 0 : index
    %367 = vector.load %arg5[%c0_143, %c0_144] : memref<8x128xf32, #tpu.memory_space<vmem>>, vector<8x128xf32>
    tpu.vector_store %arg5[%c0_143, %c0_144], %366 {strides = array<i32>} : memref<8x128xf32, #tpu.memory_space<vmem>>, vector<8x128xf32>,
    return
  }
  func.func @transform_0(%arg0: i32) -> (i32, i32) {
    %c0_i32 = arith.constant 0 : i32
    %c0_i32_0 = arith.constant 0 : i32
    return %arg0, %c0_i32 : i32, i32
  }
  func.func @transform_1(%arg0: i32) -> (i32, i32) {
    %c0_i32 = arith.constant 0 : i32
    %c0_i32_0 = arith.constant 0 : i32
    return %arg0, %c0_i32 : i32, i32
  }
  func.func @transform_2(%arg0: i32) -> (i32, i32) {
    %c0_i32 = arith.constant 0 : i32
    %c0_i32_0 = arith.constant 0 : i32
    return %arg0, %c0_i32 : i32, i32
  }
  func.func @transform_3(%arg0: i32) -> (i32, i32) {
    %c0_i32 = arith.constant 0 : i32
    %c0_i32_0 = arith.constant 0 : i32
    return %arg0, %c0_i32 : i32, i32
  }
  func.func @transform_4(%arg0: i32) -> (i32, i32) {
    %c0_i32 = arith.constant 0 : i32
    %c0_i32_0 = arith.constant 0 : i32
    return %arg0, %c0_i32 : i32, i32
  }
}

</mosaic_0001>

<llo_original>
// kernel: tpu_custom_call.1
$region0: #{tpu_custom_call.1}
  #allocation0 [shape = 'u32[]', space=smem, size = 0x4, offset = 0x4, fixed_abs, tag = 'smem constant byte address 0x4 - core index']
  #allocation1 [shape = 'u32[144,128]{1,0:T(1,128)}', space=vmem, size = 0x12000, scoped, tag = 'internal scratch']
  %s0 = inlined_call_operand.hbm [shape: f32[8,128], index: 0, kind: input, shape index: {}]
  %s1 = inlined_call_operand.hbm [shape: f32[8,128], index: 1, kind: input, shape index: {}]
  %s2 = inlined_call_operand.hbm [shape: f32[8,128], index: 2, kind: input, shape index: {}]
  %s3 = inlined_call_operand.hbm [shape: f32[8,128], index: 3, kind: input, shape index: {}]
  %s4 = inlined_call_operand.hbm [shape: f32[8,128], index: 4, kind: output, shape index: {}]
  %s5 = sld [smem:[#allocation0]]
  $region84: #{tpu_custom_call.1} parent=0
    _
  %s7 = ssub.s32 1, %s5
  %s8 = scalar_select 0, %s7, %s5
  $region1: #{tpu_custom_call.1} parent=0
    #allocation2 [shape = 'u8[4096]{0}', space=vmem, size = 0x1000, scoped, tag = 'input window, operand 0, single buffered']
    #allocation3 [shape = 's32[1]{0}', space=sflag, size = 0x4, scoped, tag = 'scoped memory for tpu_custom_call.1']
    #allocation4 [shape = 's32[1]{0}', space=sflag, size = 0x4, scoped, tag = 'scoped memory for tpu_custom_call.1']
    #allocation5 [shape = 'u8[4096]{0}', space=vmem, size = 0x1000, scoped, tag = 'input window, operand 1, single buffered']
    #allocation6 [shape = 's32[1]{0}', space=sflag, size = 0x4, scoped, tag = 'scoped memory for tpu_custom_call.1']
    #allocation7 [shape = 'u8[4096]{0}', space=vmem, size = 0x1000, scoped, tag = 'input window, operand 2, single buffered']
    #allocation8 [shape = 'u8[4096]{0}', space=vmem, size = 0x1000, scoped, tag = 'input window, operand 3, single buffered']
    #allocation9 [shape = 's32[1]{0}', space=sflag, size = 0x4, scoped, tag = 'scoped memory for tpu_custom_call.1']
    #allocation10 [shape = 'u8[4096]{0}', space=vmem, size = 0x1000, scoped, tag = 'output window, operand 0, single buffered']
    %9 = vsyncpa [#allocation3], 0
    %10 = vsyncpa [#allocation6], 0
    %11 = vsyncpa [#allocation9], 0
    %12 = vsyncpa [#allocation4], 0
    // Predicated region
    $region2: #{tpu_custom_call.1} parent=1 // pred_check
      _
    $region3: #{tpu_custom_call.1} parent=1 // pred_check_branch
      %14 = sbr.rel (0) target = $region5
    $region4: #{tpu_custom_call.1} parent=1 // pred_region
      %s16 = ssub.s32 128, 128
      %17 = vsyncadd [#allocation3], %s16
      %s19 = sshll.u32 [#allocation2], 4
      %s20 = int_to_ptr.vmem [resolvable:$true] %s19
      %22 = dma.hbm_to_vmem [thread:$0]  %s0, 128, %s20, [#allocation3]
    $region5: #{tpu_custom_call.1} parent=1 // pred_fallthru
      _
    // Predicated region
    $region6: #{tpu_custom_call.1} parent=1 // pred_check
      _
    $region7: #{tpu_custom_call.1} parent=1 // pred_check_branch
      %24 = sbr.rel (0) target = $region9
    $region8: #{tpu_custom_call.1} parent=1 // pred_region
      %s26 = ssub.s32 128, 128
      %27 = vsyncadd [#allocation6], %s26
      %s29 = sshll.u32 [#allocation5], 4
      %s30 = int_to_ptr.vmem [resolvable:$true] %s29
      %32 = dma.hbm_to_vmem [thread:$0]  %s1, 128, %s30, [#allocation6]
    $region9: #{tpu_custom_call.1} parent=1 // pred_fallthru
      _
    // Predicated region
    $region10: #{tpu_custom_call.1} parent=1 // pred_check
      _
    $region11: #{tpu_custom_call.1} parent=1 // pred_check_branch
      %34 = sbr.rel (0) target = $region13
    $region12: #{tpu_custom_call.1} parent=1 // pred_region
      %s36 = ssub.s32 128, 128
      %37 = vsyncadd [#allocation6], %s36
      %s39 = sshll.u32 [#allocation7], 4
      %s40 = int_to_ptr.vmem [resolvable:$true] %s39
      %42 = dma.hbm_to_vmem [thread:$0]  %s2, 128, %s40, [#allocation6]
    $region13: #{tpu_custom_call.1} parent=1 // pred_fallthru
      _
    // Predicated region
    $region14: #{tpu_custom_call.1} parent=1 // pred_check
      _
    $region15: #{tpu_custom_call.1} parent=1 // pred_check_branch
      %44 = sbr.rel (0) target = $region17
    $region16: #{tpu_custom_call.1} parent=1 // pred_region
      %s46 = ssub.s32 128, 128
      %47 = vsyncadd [#allocation9], %s46
      %s49 = sshll.u32 [#allocation8], 4
      %s50 = int_to_ptr.vmem [resolvable:$true] %s49
      %52 = dma.hbm_to_vmem [thread:$0]  %s3, 128, %s50, [#allocation9]
    $region17: #{tpu_custom_call.1} parent=1 // pred_fallthru
      _
    // Predicated region
    $region18: #{tpu_custom_call.1} parent=1 // pred_check
      _
    $region19: #{tpu_custom_call.1} parent=1 // pred_check_branch
      %54 = sbr.rel (0) target = $region21
    $region20: #{tpu_custom_call.1} parent=1 // pred_region
      %55 = dma.done [#allocation3], 128
    $region21: #{tpu_custom_call.1} parent=1 // pred_fallthru
      _
    // Predicated region
    $region22: #{tpu_custom_call.1} parent=1 // pred_check
      _
    $region23: #{tpu_custom_call.1} parent=1 // pred_check_branch
      %57 = sbr.rel (0) target = $region25
    $region24: #{tpu_custom_call.1} parent=1 // pred_region
      %58 = dma.done [#allocation6], 128
    $region25: #{tpu_custom_call.1} parent=1 // pred_fallthru
      _
    // Predicated region
    $region26: #{tpu_custom_call.1} parent=1 // pred_check
      _
    $region27: #{tpu_custom_call.1} parent=1 // pred_check_branch
      %60 = sbr.rel (0) target = $region29
    $region28: #{tpu_custom_call.1} parent=1 // pred_region
      %61 = dma.done [#allocation6], 128
    $region29: #{tpu_custom_call.1} parent=1 // pred_fallthru
      _
    // Predicated region
    $region30: #{tpu_custom_call.1} parent=1 // pred_check
      _
    $region31: #{tpu_custom_call.1} parent=1 // pred_check_branch
      %63 = sbr.rel (0) target = $region33
    $region32: #{tpu_custom_call.1} parent=1 // pred_region
      %64 = dma.done [#allocation9], 128
    $region33: #{tpu_custom_call.1} parent=1 // pred_fallthru
      _
    %v65 = vld [vmem:[#allocation2] sm:$0xff]
    %v66 = vmax.f32 %v65, 1e-10
    %v67 = vld [vmem:[#allocation5] sm:$0xff]
    %v68 = vmax.f32 %v67, 1e-10
    %v69 = vld [vmem:[#allocation7] sm:$0xff]
    %v70 = vmax.f32 %v69, 1e-10
    %v71 = vld [vmem:[#allocation8] sm:$0xff]
    %v72 = vrsqrt.pop %v66
    %v73 = vmul.f32 %v66, %v72
    %vm74 = vcmp.eq.f32.partialorder %v66, inf
    %v75 = vsel %vm74, %v66, %v73
    %vm76 = vcmp.eq.f32.partialorder %v66, 0.0
    %v77 = vand.u32 %v66, 2147483648
    %v78 = vsel %vm76, %v77, %v75
    %v79 = vadd.f32 %v68, %v78
    %v80 = vmul.f32 %v79, %v79
    %v81 = vmul.f32 %v66, %v66
    %v82 = vrcp.pop %v80
    %v83 = vmul.f32 %v81, %v82
    %v84 = vrcp.pop %v66
    %v85 = vmul.f32 %v80, %v84
    %v86 = vmul.f32 %v66, %v82
    %v87 = vadd.f32 %v71, %v70
    %v88 = vmul.f32 %v70, %v86
    %v89 = vmax.f32 %v88, 1e-30
    %v90 = vmul.f32 %v87, %v86
    %v91 = vmax.f32 %v90, 1e-30
    %v92 = vmul.f32 %v89, 2.0
    %v93 = vmul.f32 %v83, 2.0
    %v94 = vlog2.pop %v83
    %v95 = vmul.f32 %v94, 0.6931472
    %v96 = vadd.f32 %v83, 1.0
    %v97 = vrcp.pop %v96
    %v98 = vmul.f32 676.5204, %v97
    %v99 = vadd.f32 %v98, 1.0
    %v100 = vadd.f32 %v83, 2.0
    %v101 = vrcp.pop %v100
    %v102 = vmul.f32 -1259.1392, %v101
    %v103 = vadd.f32 %v99, %v102
    %v104 = vadd.f32 %v83, 3.0
    %v105 = vrcp.pop %v104
    %v106 = vmul.f32 771.3234, %v105
    %v107 = vadd.f32 %v103, %v106
    %v108 = vadd.f32 %v83, 4.0
    %v109 = vrcp.pop %v108
    %v110 = vmul.f32 -176.61504, %v109
    %v111 = vadd.f32 %v107, %v110
    %v112 = vadd.f32 %v83, 5.0
    %v113 = vrcp.pop %v112
    %v114 = vmul.f32 12.507343, %v113
    %v115 = vadd.f32 %v111, %v114
    %v116 = vadd.f32 %v83, 6.0
    %v117 = vrcp.pop %v116
    %v118 = vmul.f32 -0.1385711, %v117
    %v119 = vadd.f32 %v115, %v118
    %v120 = vadd.f32 %v83, 7.0
    %v121 = vrcp.pop %v120
    %v122 = vmul.f32 9.984369e-06, %v121
    %v123 = vadd.f32 %v119, %v122
    %v124 = vadd.f32 %v83, 8.0
    %v125 = vrcp.pop %v124
    %v126 = vmul.f32 1.5056327e-07, %v125
    %v127 = vadd.f32 %v123, %v126
    %v128 = vadd.f32 %v120, 0.5
    %v129 = vadd.f32 %v83, 0.5
    %v130 = vlog2.pop %v128
    %v131 = vmul.f32 %v130, 0.6931472
    %v132 = vmul.f32 %v129, %v131
    %v133 = vadd.f32 %v132, 0.9189385
    %v134 = vsub.f32 %v133, %v128
    %v135 = vlog2.pop %v127
    %v136 = vmul.f32 %v135, 0.6931472
    %v137 = vadd.f32 %v134, %v136
    %v138 = vsub.f32 %v137, %v95
    %v139 = vadd.f32 %v138, %v95
    %v140 = vadd.f32 %v93, 1.0
    %v141 = vrcp.pop %v140
    %v142 = vmul.f32 676.5204, %v141
    %v143 = vadd.f32 %v142, 1.0
    %v144 = vadd.f32 %v93, 2.0
    %v145 = vrcp.pop %v144
    %v146 = vmul.f32 -1259.1392, %v145
    %v147 = vadd.f32 %v143, %v146
    %v148 = vadd.f32 %v93, 3.0
    %v149 = vrcp.pop %v148
    %v150 = vmul.f32 771.3234, %v149
    %v151 = vadd.f32 %v147, %v150
    %v152 = vadd.f32 %v93, 4.0
    %v153 = vrcp.pop %v152
    %v154 = vmul.f32 -176.61504, %v153
    %v155 = vadd.f32 %v151, %v154
    %v156 = vadd.f32 %v93, 5.0
    %v157 = vrcp.pop %v156
    %v158 = vmul.f32 12.507343, %v157
    %v159 = vadd.f32 %v155, %v158
    %v160 = vadd.f32 %v93, 6.0
    %v161 = vrcp.pop %v160
    %v162 = vmul.f32 -0.1385711, %v161
    %v163 = vadd.f32 %v159, %v162
    %v164 = vadd.f32 %v93, 7.0
    %v165 = vrcp.pop %v164
    %v166 = vmul.f32 9.984369e-06, %v165
    %v167 = vadd.f32 %v163, %v166
    %v168 = vadd.f32 %v93, 8.0
    %v169 = vrcp.pop %v168
    %v170 = vmul.f32 1.5056327e-07, %v169
    %v171 = vadd.f32 %v167, %v170
    %v172 = vadd.f32 %v164, 0.5
    %v173 = vadd.f32 %v93, 0.5
    %v174 = vlog2.pop %v172
    %v175 = vmul.f32 %v174, 0.6931472
    %v176 = vmul.f32 %v173, %v175
    %v177 = vadd.f32 %v176, 0.9189385
    %v178 = vsub.f32 %v177, %v172
    %v179 = vlog2.pop %v171
    %v180 = vmul.f32 %v179, 0.6931472
    %v181 = vadd.f32 %v178, %v180
    %v182 = vlog2.pop %v93
    %v183 = vmul.f32 %v182, 0.6931472
    %v184 = vsub.f32 %v181, %v183
    %v185 = vadd.f32 %v129, 1.0
    %v186 = vrcp.pop %v185
    %v187 = vmul.f32 676.5204, %v186
    %v188 = vadd.f32 %v187, 1.0
    %v189 = vadd.f32 %v129, 2.0
    %v190 = vrcp.pop %v189
    %v191 = vmul.f32 -1259.1392, %v190
    %v192 = vadd.f32 %v188, %v191
    %v193 = vadd.f32 %v129, 3.0
    %v194 = vrcp.pop %v193
    %v195 = vmul.f32 771.3234, %v194
    %v196 = vadd.f32 %v192, %v195
    %v197 = vadd.f32 %v129, 4.0
    %v198 = vrcp.pop %v197
    %v199 = vmul.f32 -176.61504, %v198
    %v200 = vadd.f32 %v196, %v199
    %v201 = vadd.f32 %v129, 5.0
    %v202 = vrcp.pop %v201
    %v203 = vmul.f32 12.507343, %v202
    %v204 = vadd.f32 %v200, %v203
    %v205 = vadd.f32 %v129, 6.0
    %v206 = vrcp.pop %v205
    %v207 = vmul.f32 -0.1385711, %v206
    %v208 = vadd.f32 %v204, %v207
    %v209 = vadd.f32 %v129, 7.0
    %v210 = vrcp.pop %v209
    %v211 = vmul.f32 9.984369e-06, %v210
    %v212 = vadd.f32 %v208, %v211
    %v213 = vadd.f32 %v129, 8.0
    %v214 = vrcp.pop %v213
    %v215 = vmul.f32 1.5056327e-07, %v214
    %v216 = vadd.f32 %v212, %v215
    %v217 = vadd.f32 %v209, 0.5
    %v218 = vadd.f32 %v129, 0.5
    %v219 = vlog2.pop %v217
    %v220 = vmul.f32 %v219, 0.6931472
    %v221 = vmul.f32 %v218, %v220
    %v222 = vadd.f32 %v221, 0.9189385
    %v223 = vsub.f32 %v222, %v217
    %v224 = vlog2.pop %v216
    %v225 = vmul.f32 %v224, 0.6931472
    %v226 = vadd.f32 %v223, %v225
    %v227 = vlog2.pop %v129
    %v228 = vmul.f32 %v227, 0.6931472
    %v229 = vsub.f32 %v226, %v228
    %v230 = vlog2.pop %v89
    %v231 = vmul.f32 %v230, 0.6931472
    %v232 = vlog2.pop %v91
    %v233 = vmul.f32 %v232, 0.6931472
    %v234 = vadd.f32 %v231, 0.6931472
    %v235 = vmul.f32 %v83, %v231
    %v236 = vsub.f32 %v235, %v89
    %v237 = vsub.f32 %v236, %v138
    %v238 = vmul.f32 %v237, 1.442695
    %v239 = vpow.pop %v238
    %v240 = vrcp.pop %v83
    %v241 = vmul.f32 1.0, %v240
    loop: start=0, step=1, limit=12
    $region34: #{tpu_custom_call.1} parent=1 // loop_pre_header
      _
    $region35: #{tpu_custom_call.1} parent=1 // loop_header
      %s243 = sphi 0, %s247
      %p244 = scmp.ge.s32.totalorder %s243, 12
      %v248 = vphi %v241, %v281
      %v249 = vphi %v241, %v282
    $region36: #{tpu_custom_call.1} parent=1 // loop_header_branch
      %246 = sbr.rel (%p244) target = $region40
    $region37: #{tpu_custom_call.1} parent=1 // loop_body
      %s250 = smul.u32 %s243, 4
      %s251 = sadd.s32 %s250, 1
      %s252 = scvt.s32.f32 %s251
      %v253 = vmul.f32 %v248, %v89
      %v254 = vstv %s252
      %v255 = vadd.f32 %v83, %v254
      %v256 = vrcp.pop %v255
      %v257 = vmul.f32 %v253, %v256
      %v258 = vadd.f32 %v249, %v257
      %s259 = sadd.s32 %s250, 2
      %s260 = scvt.s32.f32 %s259
      %v261 = vmul.f32 %v257, %v89
      %v262 = vstv %s260
      %v263 = vadd.f32 %v83, %v262
      %v264 = vrcp.pop %v263
      %v265 = vmul.f32 %v261, %v264
      %v266 = vadd.f32 %v258, %v265
      %s267 = sadd.s32 %s250, 3
      %s268 = scvt.s32.f32 %s267
      %v269 = vmul.f32 %v265, %v89
      %v270 = vstv %s268
      %v271 = vadd.f32 %v83, %v270
      %v272 = vrcp.pop %v271
      %v273 = vmul.f32 %v269, %v272
      %v274 = vadd.f32 %v266, %v273
      %s275 = sadd.s32 %s250, 4
      %s276 = scvt.s32.f32 %s275
      %v277 = vmul.f32 %v273, %v89
      %v278 = vstv %s276
      %v279 = vadd.f32 %v83, %v278
      %v280 = vrcp.pop %v279
      %v281 = vmul.f32 %v277, %v280
      %v282 = vadd.f32 %v274, %v281
    $region38: #{tpu_custom_call.1} parent=1 // loop_footer
      %s247 = sadd.s32 1, %s243
    $region39: #{tpu_custom_call.1} parent=1 // loop_footer_branch
      %242 = sbr.rel target = $region35
    $region40: #{tpu_custom_call.1} parent=1 // loop_exit
      _
    %v283 = vmul.f32 %v249, %v239
    %v284 = vadd.f32 %v89, 1.0
    %v285 = vsub.f32 %v284, %v83
    %v286 = vand.u32 2147483647, %v285
    %vm287 = vcmp.lt.f32.partialorder %v286, 1e-30
    %v288 = vsel %vm287, 1e-30, %v285
    %v289 = vrcp.pop %v288
    %v290 = vmul.f32 %v288, %v289
    %v291 = vsub.f32 2.0, %v290
    %v292 = vmul.f32 %v289, %v291
    loop: start=0, step=1, limit=12
    $region41: #{tpu_custom_call.1} parent=1 // loop_pre_header
      _
    $region42: #{tpu_custom_call.1} parent=1 // loop_header
      %s294 = sphi 0, %s298
      %p295 = scmp.ge.s32.totalorder %s294, 12
      %v299 = vphi 1e+30, %v408
      %v300 = vphi %v292, %v412
      %v301 = vphi %v292, %v414
    $region43: #{tpu_custom_call.1} parent=1 // loop_header_branch
      %297 = sbr.rel (%p295) target = $region47
    $region44: #{tpu_custom_call.1} parent=1 // loop_body
      %s302 = smul.u32 %s294, 4
      %s303 = sadd.s32 %s302, 1
      %s304 = scvt.s32.f32 %s303
      %v305 = vstv %s304
      %v306 = vsub.f32 %v83, %v305
      %v307 = vmul.f32 %v305, %v306
      %s308 = smul.f32 %s304, 2.0
      %v309 = vstv %s308
      %v310 = vadd.f32 %v285, %v309
      %v311 = vmul.f32 %v307, %v300
      %v312 = vadd.f32 %v311, %v310
      %v313 = vand.u32 2147483647, %v312
      %vm314 = vcmp.lt.f32.partialorder %v313, 1e-30
      %v315 = vsel %vm314, 1e-30, %v312
      %v316 = vrcp.pop %v299
      %v317 = vmul.f32 %v299, %v316
      %v318 = vsub.f32 2.0, %v317
      %v319 = vmul.f32 %v316, %v318
      %v320 = vmul.f32 %v307, %v319
      %v321 = vadd.f32 %v310, %v320
      %v322 = vand.u32 2147483647, %v321
      %vm323 = vcmp.lt.f32.partialorder %v322, 1e-30
      %v324 = vsel %vm323, 1e-30, %v321
      %v325 = vrcp.pop %v315
      %v326 = vmul.f32 %v315, %v325
      %v327 = vsub.f32 2.0, %v326
      %v328 = vmul.f32 %v325, %v327
      %v329 = vmul.f32 %v328, %v324
      %v330 = vmul.f32 %v301, %v329
      %s331 = sadd.s32 %s302, 2
      %s332 = scvt.s32.f32 %s331
      %v333 = vstv %s332
      %v334 = vsub.f32 %v83, %v333
      %v335 = vmul.f32 %v333, %v334
      %s336 = smul.f32 %s332, 2.0
      %v337 = vstv %s336
      %v338 = vadd.f32 %v285, %v337
      %v339 = vmul.f32 %v335, %v328
      %v340 = vadd.f32 %v339, %v338
      %v341 = vand.u32 2147483647, %v340
      %vm342 = vcmp.lt.f32.partialorder %v341, 1e-30
      %v343 = vsel %vm342, 1e-30, %v340
      %v344 = vrcp.pop %v324
      %v345 = vmul.f32 %v324, %v344
      %v346 = vsub.f32 2.0, %v345
      %v347 = vmul.f32 %v344, %v346
      %v348 = vmul.f32 %v335, %v347
      %v349 = vadd.f32 %v338, %v348
      %v350 = vand.u32 2147483647, %v349
      %vm351 = vcmp.lt.f32.partialorder %v350, 1e-30
      %v352 = vsel %vm351, 1e-30, %v349
      %v353 = vrcp.pop %v343
      %v354 = vmul.f32 %v343, %v353
      %v355 = vsub.f32 2.0, %v354
      %v356 = vmul.f32 %v353, %v355
      %v357 = vmul.f32 %v356, %v352
      %v358 = vmul.f32 %v330, %v357
      %s359 = sadd.s32 %s302, 3
      %s360 = scvt.s32.f32 %s359
      %v361 = vstv %s360
      %v362 = vsub.f32 %v83, %v361
      %v363 = vmul.f32 %v361, %v362
      %s364 = smul.f32 %s360, 2.0
      %v365 = vstv %s364
      %v366 = vadd.f32 %v285, %v365
      %v367 = vmul.f32 %v363, %v356
      %v368 = vadd.f32 %v367, %v366
      %v369 = vand.u32 2147483647, %v368
      %vm370 = vcmp.lt.f32.partialorder %v369, 1e-30
      %v371 = vsel %vm370, 1e-30, %v368
      %v372 = vrcp.pop %v352
      %v373 = vmul.f32 %v352, %v372
      %v374 = vsub.f32 2.0, %v373
      %v375 = vmul.f32 %v372, %v374
      %v376 = vmul.f32 %v363, %v375
      %v377 = vadd.f32 %v366, %v376
      %v378 = vand.u32 2147483647, %v377
      %vm379 = vcmp.lt.f32.partialorder %v378, 1e-30
      %v380 = vsel %vm379, 1e-30, %v377
      %v381 = vrcp.pop %v371
      %v382 = vmul.f32 %v371, %v381
      %v383 = vsub.f32 2.0, %v382
      %v384 = vmul.f32 %v381, %v383
      %v385 = vmul.f32 %v384, %v380
      %v386 = vmul.f32 %v358, %v385
      %s387 = sadd.s32 %s302, 4
      %s388 = scvt.s32.f32 %s387
      %v389 = vstv %s388
      %v390 = vsub.f32 %v83, %v389
      %v391 = vmul.f32 %v389, %v390
      %s392 = smul.f32 %s388, 2.0
      %v393 = vstv %s392
      %v394 = vadd.f32 %v285, %v393
      %v395 = vmul.f32 %v391, %v384
      %v396 = vadd.f32 %v395, %v394
      %v397 = vand.u32 2147483647, %v396
      %vm398 = vcmp.lt.f32.partialorder %v397, 1e-30
      %v399 = vsel %vm398, 1e-30, %v396
      %v400 = vrcp.pop %v380
      %v401 = vmul.f32 %v380, %v400
      %v402 = vsub.f32 2.0, %v401
      %v403 = vmul.f32 %v400, %v402
      %v404 = vmul.f32 %v391, %v403
      %v405 = vadd.f32 %v394, %v404
      %v406 = vand.u32 2147483647, %v405
      %vm407 = vcmp.lt.f32.partialorder %v406, 1e-30
      %v408 = vsel %vm407, 1e-30, %v405
      %v409 = vrcp.pop %v399
      %v410 = vmul.f32 %v399, %v409
      %v411 = vsub.f32 2.0, %v410
      %v412 = vmul.f32 %v409, %v411
      %v413 = vmul.f32 %v412, %v408
      %v414 = vmul.f32 %v386, %v413
    $region45: #{tpu_custom_call.1} parent=1 // loop_footer
      %s298 = sadd.s32 1, %s294
    $region46: #{tpu_custom_call.1} parent=1 // loop_footer_branch
      %293 = sbr.rel target = $region42
    $region47: #{tpu_custom_call.1} parent=1 // loop_exit
      _
    %v415 = vmul.f32 %v239, %v301
    %v416 = vsub.f32 1.0, %v415
    %vm417 = vcmp.lt.f32.partialorder %v89, %v96
    %v418 = vsel %vm417, %v283, %v416
    %v419 = vmax.f32 %v418, 0.0
    %v420 = vmin.f32 %v419, 1.0
    %v421 = vmul.f32 %v83, %v233
    %v422 = vsub.f32 %v421, %v91
    %v423 = vsub.f32 %v422, %v138
    %v424 = vmul.f32 %v423, 1.442695
    %v425 = vpow.pop %v424
    loop: start=0, step=1, limit=12
    $region48: #{tpu_custom_call.1} parent=1 // loop_pre_header
      _
    $region49: #{tpu_custom_call.1} parent=1 // loop_header
      %s427 = sphi 0, %s431
      %p428 = scmp.ge.s32.totalorder %s427, 12
      %v432 = vphi %v241, %v465
      %v433 = vphi %v241, %v466
    $region50: #{tpu_custom_call.1} parent=1 // loop_header_branch
      %430 = sbr.rel (%p428) target = $region54
    $region51: #{tpu_custom_call.1} parent=1 // loop_body
      %s434 = smul.u32 %s427, 4
      %s435 = sadd.s32 %s434, 1
      %s436 = scvt.s32.f32 %s435
      %v437 = vmul.f32 %v432, %v91
      %v438 = vstv %s436
      %v439 = vadd.f32 %v83, %v438
      %v440 = vrcp.pop %v439
      %v441 = vmul.f32 %v437, %v440
      %v442 = vadd.f32 %v433, %v441
      %s443 = sadd.s32 %s434, 2
      %s444 = scvt.s32.f32 %s443
      %v445 = vmul.f32 %v441, %v91
      %v446 = vstv %s444
      %v447 = vadd.f32 %v83, %v446
      %v448 = vrcp.pop %v447
      %v449 = vmul.f32 %v445, %v448
      %v450 = vadd.f32 %v442, %v449
      %s451 = sadd.s32 %s434, 3
      %s452 = scvt.s32.f32 %s451
      %v453 = vmul.f32 %v449, %v91
      %v454 = vstv %s452
      %v455 = vadd.f32 %v83, %v454
      %v456 = vrcp.pop %v455
      %v457 = vmul.f32 %v453, %v456
      %v458 = vadd.f32 %v450, %v457
      %s459 = sadd.s32 %s434, 4
      %s460 = scvt.s32.f32 %s459
      %v461 = vmul.f32 %v457, %v91
      %v462 = vstv %s460
      %v463 = vadd.f32 %v83, %v462
      %v464 = vrcp.pop %v463
      %v465 = vmul.f32 %v461, %v464
      %v466 = vadd.f32 %v458, %v465
    $region52: #{tpu_custom_call.1} parent=1 // loop_footer
      %s431 = sadd.s32 1, %s427
    $region53: #{tpu_custom_call.1} parent=1 // loop_footer_branch
      %426 = sbr.rel target = $region49
    $region54: #{tpu_custom_call.1} parent=1 // loop_exit
      _
    %v467 = vmul.f32 %v433, %v425
    %v468 = vadd.f32 %v91, 1.0
    %v469 = vsub.f32 %v468, %v83
    %v470 = vand.u32 2147483647, %v469
    %vm471 = vcmp.lt.f32.partialorder %v470, 1e-30
    %v472 = vsel %vm471, 1e-30, %v469
    %v473 = vrcp.pop %v472
    %v474 = vmul.f32 %v472, %v473
    %v475 = vsub.f32 2.0, %v474
    %v476 = vmul.f32 %v473, %v475
    loop: start=0, step=1, limit=12
    $region55: #{tpu_custom_call.1} parent=1 // loop_pre_header
      _
    $region56: #{tpu_custom_call.1} parent=1 // loop_header
      %s478 = sphi 0, %s482
      %p479 = scmp.ge.s32.totalorder %s478, 12
      %v483 = vphi 1e+30, %v592
      %v484 = vphi %v476, %v596
      %v485 = vphi %v476, %v598
    $region57: #{tpu_custom_call.1} parent=1 // loop_header_branch
      %481 = sbr.rel (%p479) target = $region61
    $region58: #{tpu_custom_call.1} parent=1 // loop_body
      %s486 = smul.u32 %s478, 4
      %s487 = sadd.s32 %s486, 1
      %s488 = scvt.s32.f32 %s487
      %v489 = vstv %s488
      %v490 = vsub.f32 %v83, %v489
      %v491 = vmul.f32 %v489, %v490
      %s492 = smul.f32 %s488, 2.0
      %v493 = vstv %s492
      %v494 = vadd.f32 %v469, %v493
      %v495 = vmul.f32 %v491, %v484
      %v496 = vadd.f32 %v495, %v494
      %v497 = vand.u32 2147483647, %v496
      %vm498 = vcmp.lt.f32.partialorder %v497, 1e-30
      %v499 = vsel %vm498, 1e-30, %v496
      %v500 = vrcp.pop %v483
      %v501 = vmul.f32 %v483, %v500
      %v502 = vsub.f32 2.0, %v501
      %v503 = vmul.f32 %v500, %v502
      %v504 = vmul.f32 %v491, %v503
      %v505 = vadd.f32 %v494, %v504
      %v506 = vand.u32 2147483647, %v505
      %vm507 = vcmp.lt.f32.partialorder %v506, 1e-30
      %v508 = vsel %vm507, 1e-30, %v505
      %v509 = vrcp.pop %v499
      %v510 = vmul.f32 %v499, %v509
      %v511 = vsub.f32 2.0, %v510
      %v512 = vmul.f32 %v509, %v511
      %v513 = vmul.f32 %v512, %v508
      %v514 = vmul.f32 %v485, %v513
      %s515 = sadd.s32 %s486, 2
      %s516 = scvt.s32.f32 %s515
      %v517 = vstv %s516
      %v518 = vsub.f32 %v83, %v517
      %v519 = vmul.f32 %v517, %v518
      %s520 = smul.f32 %s516, 2.0
      %v521 = vstv %s520
      %v522 = vadd.f32 %v469, %v521
      %v523 = vmul.f32 %v519, %v512
      %v524 = vadd.f32 %v523, %v522
      %v525 = vand.u32 2147483647, %v524
      %vm526 = vcmp.lt.f32.partialorder %v525, 1e-30
      %v527 = vsel %vm526, 1e-30, %v524
      %v528 = vrcp.pop %v508
      %v529 = vmul.f32 %v508, %v528
      %v530 = vsub.f32 2.0, %v529
      %v531 = vmul.f32 %v528, %v530
      %v532 = vmul.f32 %v519, %v531
      %v533 = vadd.f32 %v522, %v532
      %v534 = vand.u32 2147483647, %v533
      %vm535 = vcmp.lt.f32.partialorder %v534, 1e-30
      %v536 = vsel %vm535, 1e-30, %v533
      %v537 = vrcp.pop %v527
      %v538 = vmul.f32 %v527, %v537
      %v539 = vsub.f32 2.0, %v538
      %v540 = vmul.f32 %v537, %v539
      %v541 = vmul.f32 %v540, %v536
      %v542 = vmul.f32 %v514, %v541
      %s543 = sadd.s32 %s486, 3
      %s544 = scvt.s32.f32 %s543
      %v545 = vstv %s544
      %v546 = vsub.f32 %v83, %v545
      %v547 = vmul.f32 %v545, %v546
      %s548 = smul.f32 %s544, 2.0
      %v549 = vstv %s548
      %v550 = vadd.f32 %v469, %v549
      %v551 = vmul.f32 %v547, %v540
      %v552 = vadd.f32 %v551, %v550
      %v553 = vand.u32 2147483647, %v552
      %vm554 = vcmp.lt.f32.partialorder %v553, 1e-30
      %v555 = vsel %vm554, 1e-30, %v552
      %v556 = vrcp.pop %v536
      %v557 = vmul.f32 %v536, %v556
      %v558 = vsub.f32 2.0, %v557
      %v559 = vmul.f32 %v556, %v558
      %v560 = vmul.f32 %v547, %v559
      %v561 = vadd.f32 %v550, %v560
      %v562 = vand.u32 2147483647, %v561
      %vm563 = vcmp.lt.f32.partialorder %v562, 1e-30
      %v564 = vsel %vm563, 1e-30, %v561
      %v565 = vrcp.pop %v555
      %v566 = vmul.f32 %v555, %v565
      %v567 = vsub.f32 2.0, %v566
      %v568 = vmul.f32 %v565, %v567
      %v569 = vmul.f32 %v568, %v564
      %v570 = vmul.f32 %v542, %v569
      %s571 = sadd.s32 %s486, 4
      %s572 = scvt.s32.f32 %s571
      %v573 = vstv %s572
      %v574 = vsub.f32 %v83, %v573
      %v575 = vmul.f32 %v573, %v574
      %s576 = smul.f32 %s572, 2.0
      %v577 = vstv %s576
      %v578 = vadd.f32 %v469, %v577
      %v579 = vmul.f32 %v575, %v568
      %v580 = vadd.f32 %v579, %v578
      %v581 = vand.u32 2147483647, %v580
      %vm582 = vcmp.lt.f32.partialorder %v581, 1e-30
      %v583 = vsel %vm582, 1e-30, %v580
      %v584 = vrcp.pop %v564
      %v585 = vmul.f32 %v564, %v584
      %v586 = vsub.f32 2.0, %v585
      %v587 = vmul.f32 %v584, %v586
      %v588 = vmul.f32 %v575, %v587
      %v589 = vadd.f32 %v578, %v588
      %v590 = vand.u32 2147483647, %v589
      %vm591 = vcmp.lt.f32.partialorder %v590, 1e-30
      %v592 = vsel %vm591, 1e-30, %v589
      %v593 = vrcp.pop %v583
      %v594 = vmul.f32 %v583, %v593
      %v595 = vsub.f32 2.0, %v594
      %v596 = vmul.f32 %v593, %v595
      %v597 = vmul.f32 %v596, %v592
      %v598 = vmul.f32 %v570, %v597
    $region59: #{tpu_custom_call.1} parent=1 // loop_footer
      %s482 = sadd.s32 1, %s478
    $region60: #{tpu_custom_call.1} parent=1 // loop_footer_branch
      %477 = sbr.rel target = $region56
    $region61: #{tpu_custom_call.1} parent=1 // loop_exit
      _
    %v599 = vmul.f32 %v425, %v485
    %v600 = vsub.f32 1.0, %v599
    %vm601 = vcmp.lt.f32.partialorder %v91, %v96
    %v602 = vsel %vm601, %v467, %v600
    %v603 = vmax.f32 %v602, 0.0
    %v604 = vmin.f32 %v603, 1.0
    %v605 = vmul.f32 %v93, %v234
    %v606 = vsub.f32 %v605, %v92
    %v607 = vsub.f32 %v606, %v184
    %v608 = vmul.f32 %v607, 1.442695
    %v609 = vpow.pop %v608
    %v610 = vrcp.pop %v93
    %v611 = vmul.f32 1.0, %v610
    loop: start=0, step=1, limit=12
    $region62: #{tpu_custom_call.1} parent=1 // loop_pre_header
      _
    $region63: #{tpu_custom_call.1} parent=1 // loop_header
      %s613 = sphi 0, %s617
      %p614 = scmp.ge.s32.totalorder %s613, 12
      %v618 = vphi %v611, %v651
      %v619 = vphi %v611, %v652
    $region64: #{tpu_custom_call.1} parent=1 // loop_header_branch
      %616 = sbr.rel (%p614) target = $region68
    $region65: #{tpu_custom_call.1} parent=1 // loop_body
      %s620 = smul.u32 %s613, 4
      %s621 = sadd.s32 %s620, 1
      %s622 = scvt.s32.f32 %s621
      %v623 = vmul.f32 %v618, %v92
      %v624 = vstv %s622
      %v625 = vadd.f32 %v93, %v624
      %v626 = vrcp.pop %v625
      %v627 = vmul.f32 %v623, %v626
      %v628 = vadd.f32 %v619, %v627
      %s629 = sadd.s32 %s620, 2
      %s630 = scvt.s32.f32 %s629
      %v631 = vmul.f32 %v627, %v92
      %v632 = vstv %s630
      %v633 = vadd.f32 %v93, %v632
      %v634 = vrcp.pop %v633
      %v635 = vmul.f32 %v631, %v634
      %v636 = vadd.f32 %v628, %v635
      %s637 = sadd.s32 %s620, 3
      %s638 = scvt.s32.f32 %s637
      %v639 = vmul.f32 %v635, %v92
      %v640 = vstv %s638
      %v641 = vadd.f32 %v93, %v640
      %v642 = vrcp.pop %v641
      %v643 = vmul.f32 %v639, %v642
      %v644 = vadd.f32 %v636, %v643
      %s645 = sadd.s32 %s620, 4
      %s646 = scvt.s32.f32 %s645
      %v647 = vmul.f32 %v643, %v92
      %v648 = vstv %s646
      %v649 = vadd.f32 %v93, %v648
      %v650 = vrcp.pop %v649
      %v651 = vmul.f32 %v647, %v650
      %v652 = vadd.f32 %v644, %v651
    $region66: #{tpu_custom_call.1} parent=1 // loop_footer
      %s617 = sadd.s32 1, %s613
    $region67: #{tpu_custom_call.1} parent=1 // loop_footer_branch
      %612 = sbr.rel target = $region63
    $region68: #{tpu_custom_call.1} parent=1 // loop_exit
      _
    %v653 = vmul.f32 %v619, %v609
    %v654 = vadd.f32 %v92, 1.0
    %v655 = vsub.f32 %v654, %v93
    %v656 = vand.u32 2147483647, %v655
    %vm657 = vcmp.lt.f32.partialorder %v656, 1e-30
    %v658 = vsel %vm657, 1e-30, %v655
    %v659 = vrcp.pop %v658
    %v660 = vmul.f32 %v658, %v659
    %v661 = vsub.f32 2.0, %v660
    %v662 = vmul.f32 %v659, %v661
    loop: start=0, step=1, limit=12
    $region69: #{tpu_custom_call.1} parent=1 // loop_pre_header
      _
    $region70: #{tpu_custom_call.1} parent=1 // loop_header
      %s664 = sphi 0, %s668
      %p665 = scmp.ge.s32.totalorder %s664, 12
      %v669 = vphi 1e+30, %v778
      %v670 = vphi %v662, %v782
      %v671 = vphi %v662, %v784
    $region71: #{tpu_custom_call.1} parent=1 // loop_header_branch
      %667 = sbr.rel (%p665) target = $region75
    $region72: #{tpu_custom_call.1} parent=1 // loop_body
      %s672 = smul.u32 %s664, 4
      %s673 = sadd.s32 %s672, 1
      %s674 = scvt.s32.f32 %s673
      %v675 = vstv %s674
      %v676 = vsub.f32 %v93, %v675
      %v677 = vmul.f32 %v675, %v676
      %s678 = smul.f32 %s674, 2.0
      %v679 = vstv %s678
      %v680 = vadd.f32 %v655, %v679
      %v681 = vmul.f32 %v677, %v670
      %v682 = vadd.f32 %v681, %v680
      %v683 = vand.u32 2147483647, %v682
      %vm684 = vcmp.lt.f32.partialorder %v683, 1e-30
      %v685 = vsel %vm684, 1e-30, %v682
      %v686 = vrcp.pop %v669
      %v687 = vmul.f32 %v669, %v686
      %v688 = vsub.f32 2.0, %v687
      %v689 = vmul.f32 %v686, %v688
      %v690 = vmul.f32 %v677, %v689
      %v691 = vadd.f32 %v680, %v690
      %v692 = vand.u32 2147483647, %v691
      %vm693 = vcmp.lt.f32.partialorder %v692, 1e-30
      %v694 = vsel %vm693, 1e-30, %v691
      %v695 = vrcp.pop %v685
      %v696 = vmul.f32 %v685, %v695
      %v697 = vsub.f32 2.0, %v696
      %v698 = vmul.f32 %v695, %v697
      %v699 = vmul.f32 %v698, %v694
      %v700 = vmul.f32 %v671, %v699
      %s701 = sadd.s32 %s672, 2
      %s702 = scvt.s32.f32 %s701
      %v703 = vstv %s702
      %v704 = vsub.f32 %v93, %v703
      %v705 = vmul.f32 %v703, %v704
      %s706 = smul.f32 %s702, 2.0
      %v707 = vstv %s706
      %v708 = vadd.f32 %v655, %v707
      %v709 = vmul.f32 %v705, %v698
      %v710 = vadd.f32 %v709, %v708
      %v711 = vand.u32 2147483647, %v710
      %vm712 = vcmp.lt.f32.partialorder %v711, 1e-30
      %v713 = vsel %vm712, 1e-30, %v710
      %v714 = vrcp.pop %v694
      %v715 = vmul.f32 %v694, %v714
      %v716 = vsub.f32 2.0, %v715
      %v717 = vmul.f32 %v714, %v716
      %v718 = vmul.f32 %v705, %v717
      %v719 = vadd.f32 %v708, %v718
      %v720 = vand.u32 2147483647, %v719
      %vm721 = vcmp.lt.f32.partialorder %v720, 1e-30
      %v722 = vsel %vm721, 1e-30, %v719
      %v723 = vrcp.pop %v713
      %v724 = vmul.f32 %v713, %v723
      %v725 = vsub.f32 2.0, %v724
      %v726 = vmul.f32 %v723, %v725
      %v727 = vmul.f32 %v726, %v722
      %v728 = vmul.f32 %v700, %v727
      %s729 = sadd.s32 %s672, 3
      %s730 = scvt.s32.f32 %s729
      %v731 = vstv %s730
      %v732 = vsub.f32 %v93, %v731
      %v733 = vmul.f32 %v731, %v732
      %s734 = smul.f32 %s730, 2.0
      %v735 = vstv %s734
      %v736 = vadd.f32 %v655, %v735
      %v737 = vmul.f32 %v733, %v726
      %v738 = vadd.f32 %v737, %v736
      %v739 = vand.u32 2147483647, %v738
      %vm740 = vcmp.lt.f32.partialorder %v739, 1e-30
      %v741 = vsel %vm740, 1e-30, %v738
      %v742 = vrcp.pop %v722
      %v743 = vmul.f32 %v722, %v742
      %v744 = vsub.f32 2.0, %v743
      %v745 = vmul.f32 %v742, %v744
      %v746 = vmul.f32 %v733, %v745
      %v747 = vadd.f32 %v736, %v746
      %v748 = vand.u32 2147483647, %v747
      %vm749 = vcmp.lt.f32.partialorder %v748, 1e-30
      %v750 = vsel %vm749, 1e-30, %v747
      %v751 = vrcp.pop %v741
      %v752 = vmul.f32 %v741, %v751
      %v753 = vsub.f32 2.0, %v752
      %v754 = vmul.f32 %v751, %v753
      %v755 = vmul.f32 %v754, %v750
      %v756 = vmul.f32 %v728, %v755
      %s757 = sadd.s32 %s672, 4
      %s758 = scvt.s32.f32 %s757
      %v759 = vstv %s758
      %v760 = vsub.f32 %v93, %v759
      %v761 = vmul.f32 %v759, %v760
      %s762 = smul.f32 %s758, 2.0
      %v763 = vstv %s762
      %v764 = vadd.f32 %v655, %v763
      %v765 = vmul.f32 %v761, %v754
      %v766 = vadd.f32 %v765, %v764
      %v767 = vand.u32 2147483647, %v766
      %vm768 = vcmp.lt.f32.partialorder %v767, 1e-30
      %v769 = vsel %vm768, 1e-30, %v766
      %v770 = vrcp.pop %v750
      %v771 = vmul.f32 %v750, %v770
      %v772 = vsub.f32 2.0, %v771
      %v773 = vmul.f32 %v770, %v772
      %v774 = vmul.f32 %v761, %v773
      %v775 = vadd.f32 %v764, %v774
      %v776 = vand.u32 2147483647, %v775
      %vm777 = vcmp.lt.f32.partialorder %v776, 1e-30
      %v778 = vsel %vm777, 1e-30, %v775
      %v779 = vrcp.pop %v769
      %v780 = vmul.f32 %v769, %v779
      %v781 = vsub.f32 2.0, %v780
      %v782 = vmul.f32 %v779, %v781
      %v783 = vmul.f32 %v782, %v778
      %v784 = vmul.f32 %v756, %v783
    $region73: #{tpu_custom_call.1} parent=1 // loop_footer
      %s668 = sadd.s32 1, %s664
    $region74: #{tpu_custom_call.1} parent=1 // loop_footer_branch
      %663 = sbr.rel target = $region70
    $region75: #{tpu_custom_call.1} parent=1 // loop_exit
      _
    %v785 = vmul.f32 %v609, %v671
    %v786 = vsub.f32 1.0, %v785
    %vm787 = vcmp.lt.f32.partialorder %v92, %v140
    %v788 = vsel %vm787, %v653, %v786
    %v789 = vmax.f32 %v788, 0.0
    %v790 = vmin.f32 %v789, 1.0
    %v791 = vsub.f32 %v236, %v139
    %v792 = vmul.f32 %v791, 1.442695
    %v793 = vpow.pop %v792
    %v794 = vsub.f32 %v420, %v793
    %v795 = vmax.f32 %v794, 0.0
    %v796 = vmin.f32 %v795, 1.0
    %v797 = vsub.f32 %v422, %v139
    %v798 = vmul.f32 %v797, 1.442695
    %v799 = vpow.pop %v798
    %v800 = vsub.f32 %v604, %v799
    %v801 = vmax.f32 %v800, 0.0
    %v802 = vmin.f32 %v801, 1.0
    %v803 = vadd.f32 %v229, 0.5723649
    %v804 = vsub.f32 %v803, %v139
    %v805 = vmul.f32 %v804, 1.442695
    %v806 = vpow.pop %v805
    %v807 = vmul.f32 %v604, 2.0
    %v808 = vsub.f32 %v807, 1.0
    %v809 = vmul.f32 %v87, %v808
    %v810 = vmul.f32 %v83, %v85
    %v811 = vmul.f32 %v810, 0.31830987
    %v812 = vsub.f32 0.0, %v811
    %v813 = vmul.f32 %v812, %v806
    %v814 = vsub.f32 1.0, %v790
    %v815 = vmul.f32 %v813, %v814
    %v816 = vmul.f32 %v420, 2.0
    %v817 = vmul.f32 %v816, %v796
    %v818 = vadd.f32 %v817, 1.0
    %v819 = vmul.f32 %v420, %v420
    %v820 = vsub.f32 %v818, %v819
    %v821 = vmul.f32 %v802, 2.0
    %v822 = vsub.f32 %v820, %v821
    %v823 = vmul.f32 %v810, %v822
    %v824 = vsub.f32 0.0, %v70
    %v825 = vmul.f32 %v824, %v420
    %v826 = vmul.f32 %v825, %v420
    %v827 = vadd.f32 %v809, %v815
    %v828 = vadd.f32 %v827, %v823
    %v829 = vadd.f32 %v828, %v826
    %830 = vst [vmem:[#allocation10] sm:$0xff] %v829
    // Predicated region
    $region76: #{tpu_custom_call.1} parent=1 // pred_check
      _
    $region77: #{tpu_custom_call.1} parent=1 // pred_check_branch
      %832 = sbr.rel (0) target = $region79
    $region78: #{tpu_custom_call.1} parent=1 // pred_region
      %s834 = ssub.s32 128, 128
      %835 = vsyncadd [#allocation4], %s834
      %s837 = sshll.u32 [#allocation10], 4
      %s838 = int_to_ptr.vmem [resolvable:$true] %s837
      %840 = dma.vmem_to_hbm [thread:$0]  %s838, 128, %s4, [#allocation4]
    $region79: #{tpu_custom_call.1} parent=1 // pred_fallthru
      _
    // Predicated region
    $region80: #{tpu_custom_call.1} parent=1 // pred_check
      _
    $region81: #{tpu_custom_call.1} parent=1 // pred_check_branch
      %842 = sbr.rel (0) target = $region83
    $region82: #{tpu_custom_call.1} parent=1 // pred_region
      %843 = dma.done [#allocation4], 128
    $region83: #{tpu_custom_call.1} parent=1 // pred_fallthru
      _
    %844 = vsyncpa [#allocation3], 1
    %845 = vsyncpa [#allocation6], 1
    %846 = vsyncpa [#allocation9], 1
    %847 = vsyncpa [#allocation4], 1

</llo_original>
